<compile_context>
chip_gen: v6e
topology: v6e:2x2x1
jax: 0.10.0
libtpu: 0.0.40
codegen_flags: <defaults>
</compile_context>

<pallas_src>
import functools
import math

import jax
import jax.numpy as jnp
from jax.experimental import pallas as pl
from jax.experimental.pallas import tpu as pltpu


# ----------------------------- in-kernel helpers -----------------------------

def _layernorm(x, g, b, eps=1e-5):
    mu = jnp.mean(x, axis=-1, keepdims=True)
    var = jnp.mean((x - mu) ** 2, axis=-1, keepdims=True)
    return (x - mu) * jax.lax.rsqrt(var + eps) * g + b


def _gelu_tanh(x):
    # TODO(synk): torch nn.GELU() defaults to exact erf GELU; tanh approximation
    # is used because erf has no guaranteed Mosaic lowering (max diff ~1e-3).
    c = math.sqrt(2.0 / math.pi)
    return 0.5 * x * (1.0 + jnp.tanh(c * (x + 0.044715 * x * x * x)))


# Row layout of the per-block "vecs" slab (depth, VEC_ROWS, D); every small
# vector is padded to D lanes so no parameter has a last dim of Dr or 1.
LN1_G, LN1_B, LN2_G, LN2_B, B_O, M2_B, SE1_B, SE2_W, SE2_B = range(9)
VEC_ROWS = 9


# ------------------------------- fused kernel --------------------------------

def se_vit_kernel(patches_ref, embed_w_ref, embed_add_ref,
                  se1_w_ref, w_qkv_ref, b_qkv_ref, wo_ref,
                  m1_w_ref, m1_b_ref, m2_w_ref, vecs_ref,
                  norm_gb_ref, head_w_ref, head_b_ref,
                  o_ref, x_scr, *, num_heads):
    d = pl.program_id(1)
    last_d = pl.num_programs(1) - 1
    cdt = w_qkv_ref.dtype                      # MXU operand dtype (bf16 default)

    N, D = x_scr.shape
    H = num_heads
    hd = D // H
    Dr = se1_w_ref.shape[-1]
    scale = 1.0 / math.sqrt(hd)

    # ---- d == 0: patch embedding + cls token + positional embedding ---------
    # patches row 0 is all-zeros and embed_add row 0 = cls_token + pos[0];
    # rows 1.. add conv bias + pos[i], so one matmul builds all tokens.
    @pl.when(d == 0)
    def _():
        x_scr[...] = (jnp.dot(patches_ref[0], embed_w_ref[...],
                              preferred_element_type=jnp.float32)
                      + embed_add_ref[...])

    x = x_scr[...]                             # (N, D) f32, resident across depth
    vecs = vecs_ref[0]                         # (VEC_ROWS, D) f32
    row = jax.lax.broadcasted_iota(jnp.int32, (N, 1), 0)

    # ---- SE gate on image tokens; cls row (row 0) passes through -------------
    se_h = jnp.maximum(
        jnp.dot(x.astype(cdt), se1_w_ref[0], preferred_element_type=jnp.float32)
        + vecs[SE1_B:SE1_B + 1, 0:Dr], 0.0)                              # (N, Dr)
    gate_logit = (jnp.sum(se_h * vecs[SE2_W:SE2_W + 1, 0:Dr],
                          axis=-1, keepdims=True)
                  + vecs[SE2_B:SE2_B + 1, 0:1])
    gate = jax.nn.sigmoid(gate_logit)
    x = x * jnp.where(row > 0, gate, 1.0)

    # ---- multi-head self-attention -------------------------------------------
    x_res = x
    xn = _layernorm(x, vecs[LN1_G:LN1_G + 1, :], vecs[LN1_B:LN1_B + 1, :])
    # One fused (N, D) @ (D, 3D) projection (lane-dense weight, single MXU pass).
    qkv = (jnp.dot(xn.astype(cdt), w_qkv_ref[0],
                   preferred_element_type=jnp.float32)
           + b_qkv_ref[0])                                               # (N, 3D)

    # Head split via static lane slices stacked along a new leading axis
    # (avoids minor-dim reshapes); heads are contiguous hd-wide column groups.
    def split_heads(off):
        return jnp.stack([qkv[:, off + h * hd: off + (h + 1) * hd]
                          for h in range(H)], axis=0)                   # (H, N, hd)

    q = split_heads(0) * scale
    k = split_heads(D)
    v = split_heads(2 * D)

    s = jnp.einsum('hqc,hmc->hqm', q.astype(cdt), k.astype(cdt),
                   preferred_element_type=jnp.float32)                  # (H, N, N)
    s = s - jnp.max(s, axis=-1, keepdims=True)
    e = jnp.exp(s)
    p = e * pl.reciprocal(jnp.sum(e, axis=-1, keepdims=True), approx=True)
    oh = jnp.einsum('hqm,hmc->hqc', p.astype(cdt), v.astype(cdt),
                    preferred_element_type=jnp.float32)                 # (H, N, hd)
    # concat(heads) @ Wo as ONE K=D matmul (no per-head out-proj / head-sum).
    attn_cat = jnp.concatenate([oh[h] for h in range(H)], axis=-1)      # (N, D)
    x = (x_res
         + jnp.dot(attn_cat.astype(cdt), wo_ref[0],
                   preferred_element_type=jnp.float32)
         + vecs[B_O:B_O + 1, :])

    # ---- MLP with residual ----------------------------------------------------
    xn2 = _layernorm(x, vecs[LN2_G:LN2_G + 1, :], vecs[LN2_B:LN2_B + 1, :])
    hm = (jnp.dot(xn2.astype(cdt), m1_w_ref[0],
                  preferred_element_type=jnp.float32) + m1_b_ref[0])
    hm = _gelu_tanh(hm)
    x = (x
         + jnp.dot(hm.astype(cdt), m2_w_ref[0],
                   preferred_element_type=jnp.float32)
         + vecs[M2_B:M2_B + 1, :])

    x_scr[...] = x

    # ---- d == depth-1: final LayerNorm + classification head on cls token ----
    @pl.when(d == last_d)
    def _():
        ngb = norm_gb_ref[...]
        cls = _layernorm(x[0:1, :], ngb[0:1, :], ngb[1:2, :])
        o_ref[0] = (jnp.dot(cls.astype(cdt), head_w_ref[...],
                            preferred_element_type=jnp.float32)
                    + head_b_ref[...]).astype(o_ref.dtype)


def se_vit_pallas_call(patches, embed_w, embed_add, stacked, norm_gb,
                       head_w, head_b, *, depth, num_heads):
    B, N, P = patches.shape
    D = embed_w.shape[1]
    C = head_w.shape[1]

    def const_spec(a):
        # Grid-invariant slabs: single-buffer them (they never change across the
        # grid), halving their VMEM footprint vs. default double-buffering.
        return pl.BlockSpec(a.shape, lambda b, d, _nd=a.ndim: (0,) * _nd,
                            pipeline_mode=pl.Buffered(1))

    def depth_spec(a):
        # Per-block weights streamed one depth step at a time: Pallas prefetches
        # block d+1 while block d computes; only ~2 blocks of weights resident.
        return pl.BlockSpec((1,) + a.shape[1:],
                            lambda b, d, _nd=a.ndim: (d,) + (0,) * (_nd - 1))

    per_depth = [stacked["se1_w"], stacked["w_qkv"], stacked["b_qkv"],
                 stacked["wo"], stacked["m1_w"], stacked["m1_b"],
                 stacked["m2_w"], stacked["vecs"]]
    consts = [norm_gb, head_w, head_b]

    in_specs = ([pl.BlockSpec((1, N, P), lambda b, d: (b, 0, 0)),
                 const_spec(embed_w), const_spec(embed_add)]
                + [depth_spec(a) for a in per_depth]
                + [const_spec(a) for a in consts])

    out = pl.pallas_call(
        functools.partial(se_vit_kernel, num_heads=num_heads),
        out_shape=jax.ShapeDtypeStruct((B, 1, C), jnp.float32),
        grid=(B, depth),
        in_specs=in_specs,
        out_specs=pl.BlockSpec((1, 1, C), lambda b, d: (b, 0, 0)),
        scratch_shapes=[pltpu.VMEM((N, D), jnp.float32)],   # resident token tensor
        compiler_params=pltpu.CompilerParams(
            # batch elements independent -> megacore-shardable on v7x;
            # depth carries the resident token scratch -> arbitrary.
            dimension_semantics=("parallel", "arbitrary"),
            # Explicit VMEM budget with headroom below v7x's 64 MiB physical.
            vmem_limit_bytes=48 * 1024 * 1024),
    )(patches, embed_w, embed_add, *per_depth, norm_gb, head_w, head_b)
    return out[:, 0, :]


# -------------------------- parameter packing (glue) --------------------------

def pack_params(params, *, compute_dtype=jnp.bfloat16):
    """Stack per-block params along depth; fuse QKV; lane-densify small vectors."""
    blocks = params["blocks"]
    D = params["conv_w"].shape[0]

    def stack(fn, dtype):
        return jnp.stack([fn(b) for b in blocks], axis=0).astype(dtype)

    def pad_row(r):                      # (1, K) -> (1, D)
        return jnp.pad(r, ((0, 0), (0, D - r.shape[1])))

    def vec_slab(b):                     # (VEC_ROWS, D)
        rows = [b["ln1_g"], b["ln1_b"], b["ln2_g"], b["ln2_b"],
                b["bo"], b["m2_b"],
                pad_row(b["se1_b"]), pad_row(b["se2_w"]), pad_row(b["se2_b"])]
        return jnp.concatenate(rows, axis=0)

    return {
        "se1_w": stack(lambda b: b["se1_w"], compute_dtype),               # (dep, D, Dr)
        # Fused QKV weight: heads contiguous along the last dim -> lane-dense.
        "w_qkv": stack(lambda b: jnp.concatenate([b["wq"], b["wk"], b["wv"]],
                                                 axis=1), compute_dtype),  # (dep, D, 3D)
        "b_qkv": stack(lambda b: jnp.concatenate([b["bq"], b["bk"], b["bv"]],
                                                 axis=1), jnp.float32),    # (dep, 1, 3D)
        "wo":    stack(lambda b: b["wo"], compute_dtype),                  # (dep, D, D)
        "m1_w":  stack(lambda b: b["m1_w"], compute_dtype),                # (dep, D, Dh)
        "m1_b":  stack(lambda b: b["m1_b"], jnp.float32),                  # (dep, 1, Dh)
        "m2_w":  stack(lambda b: b["m2_w"], compute_dtype),                # (dep, Dh, D)
        "vecs":  stack(vec_slab, jnp.float32),                             # (dep, 9, D)
    }


# ------------------------------ parameter init -------------------------------

def init_params(key, *, img_size, patch_size, in_chans, embed_dim, depth,
                num_heads, mlp_ratio, num_classes, reduction):
    D = embed_dim
    Dr = D // reduction
    Dh = int(D * mlp_ratio)
    num_patches = (img_size // patch_size) ** 2

    keys = jax.random.split(key, 4 + depth)

    def tn(k, shape, std=0.02):
        return (std * jax.random.truncated_normal(k, -2.0, 2.0, shape)).astype(jnp.float32)

    params = {
        "conv_w": tn(keys[0], (D, in_chans, patch_size, patch_size)),
        "conv_b": jnp.zeros((1, D), jnp.float32),
        "cls_token": tn(keys[1], (1, 1, D)),
        "pos_embed": tn(keys[2], (1, num_patches + 1, D)),
        "norm_g": jnp.ones((1, D), jnp.float32),
        "norm_b": jnp.zeros((1, D), jnp.float32),
        "head_w": tn(keys[3], (D, num_classes)),
        "head_b": jnp.zeros((1, num_classes), jnp.float32),
        "blocks": [],
    }

    for d in range(depth):
        ks = jax.random.split(keys[4 + d], 8)
        params["blocks"].append({
            "se1_w": tn(ks[0], (D, Dr)),
            "se1_b": jnp.zeros((1, Dr), jnp.float32),
            "se2_w": tn(ks[1], (1, Dr)),
            "se2_b": jnp.zeros((1, 1), jnp.float32),
            "ln1_g": jnp.ones((1, D), jnp.float32),
            "ln1_b": jnp.zeros((1, D), jnp.float32),
            "wq": tn(ks[2], (D, D)),
            "wk": tn(ks[3], (D, D)),
            "wv": tn(ks[4], (D, D)),
            "bq": jnp.zeros((1, D), jnp.float32),
            "bk": jnp.zeros((1, D), jnp.float32),
            "bv": jnp.zeros((1, D), jnp.float32),
            "wo": tn(ks[5], (D, D)),
            "bo": jnp.zeros((1, D), jnp.float32),
            "ln2_g": jnp.ones((1, D), jnp.float32),
            "ln2_b": jnp.zeros((1, D), jnp.float32),
            "m1_w": tn(ks[6], (D, Dh)),
            "m1_b": jnp.zeros((1, Dh), jnp.float32),
            "m2_w": tn(ks[7], (Dh, D)),
            "m2_b": jnp.zeros((1, D), jnp.float32),
        })
    return params


# --------------------------------- forward -----------------------------------

def se_vit_forward(x, params, *, patch_size, num_heads,
                   compute_dtype=jnp.bfloat16):
    B, C_in, Himg, Wimg = x.shape
    ps = patch_size
    gh, gw = Himg // ps, Wimg // ps
    D = params["conv_w"].shape[0]
    P = C_in * ps * ps
    depth = len(params["blocks"])

    # Patch extraction (glue): stride=patch conv == matmul over flattened patches.
    patches = x.reshape(B, C_in, gh, ps, gw, ps).transpose(0, 2, 4, 1, 3, 5)
    patches = patches.reshape(B, gh * gw, P)
    # Prepend a zero patch row; its projection is 0 and row 0 of embed_add holds
    # cls_token + pos[0], so the kernel builds all tokens in one matmul.
    patches_padded = jnp.concatenate(
        [jnp.zeros((B, 1, P), patches.dtype), patches], axis=1).astype(compute_dtype)

    embed_w = params["conv_w"].reshape(D, P).T.astype(compute_dtype)          # (P, D)
    pos = params["pos_embed"][0]                                              # (N, D)
    embed_add = jnp.concatenate(
        [pos[0:1] + params["cls_token"][0], pos[1:] + params["conv_b"]],
        axis=0).astype(jnp.float32)

    stacked = pack_params(params, compute_dtype=compute_dtype)
    norm_gb = jnp.concatenate([params["norm_g"], params["norm_b"]], axis=0)   # (2, D)

    # TODO(synk): for large batches on single-TC v5e/v6e, fold several batch
    # elements per grid step (block (Bt, N, P)) into the matmul M dimension;
    # kept at one element/step here so the toy batch still yields >=2 parallel
    # grid blocks for v7x's two TensorCores.
    return se_vit_pallas_call(patches_padded, embed_w, embed_add, stacked, norm_gb,
                              params["head_w"].astype(compute_dtype),
                              params["head_b"],
                              depth=depth, num_heads=num_heads)


# ----------------------------------- main -------------------------------------

if __name__ == "__main__":
    img_size, patch_size, in_chans = 32, 8, 1
    embed_dim, depth, num_heads = 32, 2, 4
    mlp_ratio, num_classes, reduction = 4.0, 2, 16
    batch = 2

    key = jax.random.PRNGKey(0)
    pkey, xkey = jax.random.split(key)
    params = init_params(pkey, img_size=img_size, patch_size=patch_size,
                         in_chans=in_chans, embed_dim=embed_dim, depth=depth,
                         num_heads=num_heads, mlp_ratio=mlp_ratio,
                         num_classes=num_classes, reduction=reduction)

    x = jax.random.normal(xkey, (batch, in_chans, img_size, img_size),
                          dtype=jnp.float32)

    fwd = jax.jit(functools.partial(se_vit_forward,
                                    patch_size=patch_size, num_heads=num_heads))
    logits = fwd(x, params)
    jax.block_until_ready(logits)

    assert logits.shape == (batch, num_classes), logits.shape
    assert bool(jnp.all(jnp.isfinite(logits)))
    print("KERNEL_OK")
</pallas_src>

<mosaic_0001>
module attributes {stable_mosaic.version = 11 : i64} {
  func.func @se_vit_kernel(%arg0: i32, %arg1: i32, %arg2: memref<1x17x64xbf16, #tpu.memory_space<vmem>>, %arg3: memref<64x32xbf16, #tpu.memory_space<vmem>>, %arg4: memref<17x32xf32, #tpu.memory_space<vmem>>, %arg5: memref<1x32x2xbf16, #tpu.memory_space<vmem>>, %arg6: memref<1x32x96xbf16, #tpu.memory_space<vmem>>, %arg7: memref<1x1x96xf32, #tpu.memory_space<vmem>>, %arg8: memref<1x32x32xbf16, #tpu.memory_space<vmem>>, %arg9: memref<1x32x128xbf16, #tpu.memory_space<vmem>>, %arg10: memref<1x1x128xf32, #tpu.memory_space<vmem>>, %arg11: memref<1x128x32xbf16, #tpu.memory_space<vmem>>, %arg12: memref<1x9x32xf32, #tpu.memory_space<vmem>>, %arg13: memref<2x32xf32, #tpu.memory_space<vmem>>, %arg14: memref<32x2xbf16, #tpu.memory_space<vmem>>, %arg15: memref<1x2xf32, #tpu.memory_space<vmem>>, %arg16: memref<1x1x2xf32, #tpu.memory_space<vmem>>, %arg17: memref<17x32xf32, #tpu.memory_space<vmem>>) attributes {dimension_semantics = [#tpu.dimension_semantics<parallel>, #tpu.dimension_semantics<arbitrary>], iteration_bounds = array<i64: 2, 2>, scalar_prefetch = 0 : i64, scratch_operands = 1 : i64, tpu.core_type = #tpu.core_type<tc>, window_params = [{transform_indices = @transform_0, window_bounds = array<i64: 1, 17, 64>}, {pipeline_mode = #tpu.pipeline_mode<synchronous>, transform_indices = @transform_1, window_bounds = array<i64: 64, 32>}, {pipeline_mode = #tpu.pipeline_mode<synchronous>, transform_indices = @transform_2, window_bounds = array<i64: 17, 32>}, {transform_indices = @transform_3, window_bounds = array<i64: 1, 32, 2>}, {transform_indices = @transform_4, window_bounds = array<i64: 1, 32, 96>}, {transform_indices = @transform_5, window_bounds = array<i64: 1, 1, 96>}, {transform_indices = @transform_6, window_bounds = array<i64: 1, 32, 32>}, {transform_indices = @transform_7, window_bounds = array<i64: 1, 32, 128>}, {transform_indices = @transform_8, window_bounds = array<i64: 1, 1, 128>}, {transform_indices = @transform_9, window_bounds = array<i64: 1, 128, 32>}, {transform_indices = @transform_10, window_bounds = array<i64: 1, 9, 32>}, {pipeline_mode = #tpu.pipeline_mode<synchronous>, transform_indices = @transform_11, window_bounds = array<i64: 2, 32>}, {pipeline_mode = #tpu.pipeline_mode<synchronous>, transform_indices = @transform_12, window_bounds = array<i64: 32, 2>}, {pipeline_mode = #tpu.pipeline_mode<synchronous>, transform_indices = @transform_13, window_bounds = array<i64: 1, 2>}, {transform_indices = @transform_14, window_bounds = array<i64: 1, 1, 2>}]} {
    %c0_i32 = arith.constant 0 : i32
    %0 = arith.cmpi eq, %arg1, %c0_i32 : i32
    %1 = arith.extui %0 : i1 to i32
    %c0_i32_0 = arith.constant 0 : i32
    %2 = arith.cmpi ne, %1, %c0_i32_0 : i32
    scf.if %2 {
      %c0_57 = arith.constant 0 : index
      %c0_58 = arith.constant 0 : index
      %c0_59 = arith.constant 0 : index
      %186 = vector.load %arg2[%c0_57, %c0_58, %c0_59] : memref<1x17x64xbf16, #tpu.memory_space<vmem>>, vector<1x17x64xbf16>
      %187 = vector.shape_cast %186 : vector<1x17x64xbf16> to vector<17x64xbf16>
      %c0_60 = arith.constant 0 : index
      %c0_61 = arith.constant 0 : index
      %188 = vector.load %arg3[%c0_60, %c0_61] : memref<64x32xbf16, #tpu.memory_space<vmem>>, vector<64x32xbf16>
      %cst_62 = arith.constant dense<0.000000e+00> : vector<17x32xf32>
      %189 = tpu.matmul %187, %188, %cst_62 {dimension_numbers = #tpu.dot_dimension_numbers<[1], [0], [0], [1], [0, 0, 1, 1], [], []>} : vector<17x64xbf16>, vector<64x32xbf16>, vector<17x32xf32> -> vector<17x32xf32>
      %c0_63 = arith.constant 0 : index
      %c0_64 = arith.constant 0 : index
      %190 = vector.load %arg4[%c0_63, %c0_64] : memref<17x32xf32, #tpu.memory_space<vmem>>, vector<17x32xf32>
      %191 = arith.addf %189, %190 : vector<17x32xf32>
      %c0_65 = arith.constant 0 : index
      %c0_66 = arith.constant 0 : index
      %192 = vector.load %arg17[%c0_65, %c0_66] : memref<17x32xf32, #tpu.memory_space<vmem>>, vector<17x32xf32>
      tpu.vector_store %arg17[%c0_65, %c0_66], %191 {strides = array<i32>} : memref<17x32xf32, #tpu.memory_space<vmem>>, vector<17x32xf32>,
    } else {
    }
    %c0 = arith.constant 0 : index
    %c0_1 = arith.constant 0 : index
    %3 = vector.load %arg17[%c0, %c0_1] : memref<17x32xf32, #tpu.memory_space<vmem>>, vector<17x32xf32>
    %c0_2 = arith.constant 0 : index
    %c0_3 = arith.constant 0 : index
    %c0_4 = arith.constant 0 : index
    %4 = vector.load %arg12[%c0_2, %c0_3, %c0_4] : memref<1x9x32xf32, #tpu.memory_space<vmem>>, vector<1x9x32xf32>
    %5 = vector.shape_cast %4 : vector<1x9x32xf32> to vector<9x32xf32>
    %6 = tpu.iota {dimensions = array<i32: 0>} : vector<17x1xi32>
    %7 = arith.truncf %3 : vector<17x32xf32> to vector<17x32xbf16>
    %c0_5 = arith.constant 0 : index
    %c0_6 = arith.constant 0 : index
    %c0_7 = arith.constant 0 : index
    %8 = vector.load %arg5[%c0_5, %c0_6, %c0_7] : memref<1x32x2xbf16, #tpu.memory_space<vmem>>, vector<1x32x2xbf16>
    %9 = vector.shape_cast %8 : vector<1x32x2xbf16> to vector<32x2xbf16>
    %cst = arith.constant dense<0.000000e+00> : vector<17x2xf32>
    %10 = tpu.matmul %7, %9, %cst {dimension_numbers = #tpu.dot_dimension_numbers<[1], [0], [0], [1], [0, 0, 1, 1], [], []>} : vector<17x32xbf16>, vector<32x2xbf16>, vector<17x2xf32> -> vector<17x2xf32>
    %11 = vector.extract_strided_slice %5 {offsets = [6, 0], sizes = [1, 2], strides = [1, 1]} : vector<9x32xf32> to vector<1x2xf32>
    %12 = vector.broadcast %11 : vector<1x2xf32> to vector<17x2xf32>
    %13 = arith.addf %10, %12 : vector<17x2xf32>
    %cst_8 = arith.constant 0.000000e+00 : f32
    %14 = vector.broadcast %cst_8 : f32 to vector<17x2xf32>
    %15 = arith.maximumf %13, %14 : vector<17x2xf32>
    %16 = vector.extract_strided_slice %5 {offsets = [7, 0], sizes = [1, 2], strides = [1, 1]} : vector<9x32xf32> to vector<1x2xf32>
    %17 = vector.broadcast %16 : vector<1x2xf32> to vector<17x2xf32>
    %18 = arith.mulf %15, %17 : vector<17x2xf32>
    %cst_9 = arith.constant dense<0.000000e+00> : vector<17xf32>
    %19 = vector.multi_reduction <add>, %18, %cst_9 [1] : vector<17x2xf32> to vector<17xf32>
    %20 = vector.shape_cast %19 : vector<17xf32> to vector<17x1xf32>
    %21 = vector.extract_strided_slice %5 {offsets = [8, 0], sizes = [1, 1], strides = [1, 1]} : vector<9x32xf32> to vector<1x1xf32>
    %22 = vector.broadcast %21 : vector<1x1xf32> to vector<17x1xf32>
    %23 = arith.addf %20, %22 : vector<17x1xf32>
    %24 = arith.negf %23 : vector<17x1xf32>
    %25 = math.exp %24 : vector<17x1xf32>
    %cst_10 = arith.constant 1.000000e+00 : f32
    %26 = vector.broadcast %cst_10 : f32 to vector<17x1xf32>
    %27 = arith.addf %26, %25 : vector<17x1xf32>
    %28 = arith.divf %26, %27 : vector<17x1xf32>
    %c0_i32_11 = arith.constant 0 : i32
    %29 = vector.broadcast %c0_i32_11 : i32 to vector<17x1xi32>
    %30 = arith.cmpi sgt, %6, %29 : vector<17x1xi32>
    %cst_12 = arith.constant 1.000000e+00 : f32
    %31 = vector.broadcast %cst_12 : f32 to vector<17x1xf32>
    %32 = arith.select %30, %28, %31 : vector<17x1xi1>, vector<17x1xf32>
    %33 = vector.broadcast %32 : vector<17x1xf32> to vector<17x32xf32>
    %34 = arith.mulf %3, %33 : vector<17x32xf32>
    %35 = vector.extract_strided_slice %5 {offsets = [0, 0], sizes = [1, 32], strides = [1, 1]} : vector<9x32xf32> to vector<1x32xf32>
    %36 = vector.extract_strided_slice %5 {offsets = [1, 0], sizes = [1, 32], strides = [1, 1]} : vector<9x32xf32> to vector<1x32xf32>
    %cst_13 = arith.constant dense<0.000000e+00> : vector<17xf32>
    %37 = vector.multi_reduction <add>, %34, %cst_13 [1] : vector<17x32xf32> to vector<17xf32>
    %38 = vector.shape_cast %37 : vector<17xf32> to vector<17x1xf32>
    %cst_14 = arith.constant 3.200000e+01 : f32
    %39 = vector.broadcast %cst_14 : f32 to vector<17x1xf32>
    %40 = arith.divf %38, %39 : vector<17x1xf32>
    %41 = vector.broadcast %40 : vector<17x1xf32> to vector<17x32xf32>
    %42 = arith.subf %34, %41 : vector<17x32xf32>
    %43 = arith.mulf %42, %42 : vector<17x32xf32>
    %cst_15 = arith.constant dense<0.000000e+00> : vector<17xf32>
    %44 = vector.multi_reduction <add>, %43, %cst_15 [1] : vector<17x32xf32> to vector<17xf32>
    %45 = vector.shape_cast %44 : vector<17xf32> to vector<17x1xf32>
    %cst_16 = arith.constant 3.200000e+01 : f32
    %46 = vector.broadcast %cst_16 : f32 to vector<17x1xf32>
    %47 = arith.divf %45, %46 : vector<17x1xf32>
    %48 = vector.broadcast %40 : vector<17x1xf32> to vector<17x32xf32>
    %49 = arith.subf %34, %48 : vector<17x32xf32>
    %cst_17 = arith.constant 9.99999974E-6 : f32
    %50 = vector.broadcast %cst_17 : f32 to vector<17x1xf32>
    %51 = arith.addf %47, %50 : vector<17x1xf32>
    %52 = math.rsqrt %51 : vector<17x1xf32>
    %53 = vector.broadcast %52 : vector<17x1xf32> to vector<17x32xf32>
    %54 = arith.mulf %49, %53 : vector<17x32xf32>
    %55 = vector.broadcast %35 : vector<1x32xf32> to vector<17x32xf32>
    %56 = arith.mulf %54, %55 : vector<17x32xf32>
    %57 = vector.broadcast %36 : vector<1x32xf32> to vector<17x32xf32>
    %58 = arith.addf %56, %57 : vector<17x32xf32>
    %59 = arith.truncf %58 : vector<17x32xf32> to vector<17x32xbf16>
    %c0_18 = arith.constant 0 : index
    %c0_19 = arith.constant 0 : index
    %c0_20 = arith.constant 0 : index
    %60 = vector.load %arg6[%c0_18, %c0_19, %c0_20] : memref<1x32x96xbf16, #tpu.memory_space<vmem>>, vector<1x32x96xbf16>
    %61 = vector.shape_cast %60 : vector<1x32x96xbf16> to vector<32x96xbf16>
    %cst_21 = arith.constant dense<0.000000e+00> : vector<17x96xf32>
    %62 = tpu.matmul %59, %61, %cst_21 {dimension_numbers = #tpu.dot_dimension_numbers<[1], [0], [0], [1], [0, 0, 1, 1], [], []>} : vector<17x32xbf16>, vector<32x96xbf16>, vector<17x96xf32> -> vector<17x96xf32>
    %c0_22 = arith.constant 0 : index
    %c0_23 = arith.constant 0 : index
    %c0_24 = arith.constant 0 : index
    %63 = vector.load %arg7[%c0_22, %c0_23, %c0_24] : memref<1x1x96xf32, #tpu.memory_space<vmem>>, vector<1x1x96xf32>
    %64 = vector.shape_cast %63 : vector<1x1x96xf32> to vector<1x96xf32>
    %65 = vector.broadcast %64 : vector<1x96xf32> to vector<17x96xf32>
    %66 = arith.addf %62, %65 : vector<17x96xf32>
    %67 = vector.extract_strided_slice %66 {offsets = [0, 0], sizes = [17, 8], strides = [1, 1]} : vector<17x96xf32> to vector<17x8xf32>
    %68 = vector.extract_strided_slice %66 {offsets = [0, 8], sizes = [17, 8], strides = [1, 1]} : vector<17x96xf32> to vector<17x8xf32>
    %69 = vector.extract_strided_slice %66 {offsets = [0, 16], sizes = [17, 8], strides = [1, 1]} : vector<17x96xf32> to vector<17x8xf32>
    %70 = vector.extract_strided_slice %66 {offsets = [0, 24], sizes = [17, 8], strides = [1, 1]} : vector<17x96xf32> to vector<17x8xf32>
    %71 = vector.shape_cast %67 : vector<17x8xf32> to vector<1x17x8xf32>
    %72 = vector.shape_cast %68 : vector<17x8xf32> to vector<1x17x8xf32>
    %73 = vector.shape_cast %69 : vector<17x8xf32> to vector<1x17x8xf32>
    %74 = vector.shape_cast %70 : vector<17x8xf32> to vector<1x17x8xf32>
    %75 = tpu.concatenate %71, %72, %73, %74 in 0 : vector<1x17x8xf32>, vector<1x17x8xf32>, vector<1x17x8xf32>, vector<1x17x8xf32> -> vector<4x17x8xf32>
    %cst_25 = arith.constant 0.353553385 : f32
    %76 = vector.broadcast %cst_25 : f32 to vector<4x17x8xf32>
    %77 = arith.mulf %75, %76 : vector<4x17x8xf32>
    %78 = vector.extract_strided_slice %66 {offsets = [0, 32], sizes = [17, 8], strides = [1, 1]} : vector<17x96xf32> to vector<17x8xf32>
    %79 = vector.extract_strided_slice %66 {offsets = [0, 40], sizes = [17, 8], strides = [1, 1]} : vector<17x96xf32> to vector<17x8xf32>
    %80 = vector.extract_strided_slice %66 {offsets = [0, 48], sizes = [17, 8], strides = [1, 1]} : vector<17x96xf32> to vector<17x8xf32>
    %81 = vector.extract_strided_slice %66 {offsets = [0, 56], sizes = [17, 8], strides = [1, 1]} : vector<17x96xf32> to vector<17x8xf32>
    %82 = vector.shape_cast %78 : vector<17x8xf32> to vector<1x17x8xf32>
    %83 = vector.shape_cast %79 : vector<17x8xf32> to vector<1x17x8xf32>
    %84 = vector.shape_cast %80 : vector<17x8xf32> to vector<1x17x8xf32>
    %85 = vector.shape_cast %81 : vector<17x8xf32> to vector<1x17x8xf32>
    %86 = tpu.concatenate %82, %83, %84, %85 in 0 : vector<1x17x8xf32>, vector<1x17x8xf32>, vector<1x17x8xf32>, vector<1x17x8xf32> -> vector<4x17x8xf32>
    %87 = vector.extract_strided_slice %66 {offsets = [0, 64], sizes = [17, 8], strides = [1, 1]} : vector<17x96xf32> to vector<17x8xf32>
    %88 = vector.extract_strided_slice %66 {offsets = [0, 72], sizes = [17, 8], strides = [1, 1]} : vector<17x96xf32> to vector<17x8xf32>
    %89 = vector.extract_strided_slice %66 {offsets = [0, 80], sizes = [17, 8], strides = [1, 1]} : vector<17x96xf32> to vector<17x8xf32>
    %90 = vector.extract_strided_slice %66 {offsets = [0, 88], sizes = [17, 8], strides = [1, 1]} : vector<17x96xf32> to vector<17x8xf32>
    %91 = vector.shape_cast %87 : vector<17x8xf32> to vector<1x17x8xf32>
    %92 = vector.shape_cast %88 : vector<17x8xf32> to vector<1x17x8xf32>
    %93 = vector.shape_cast %89 : vector<17x8xf32> to vector<1x17x8xf32>
    %94 = vector.shape_cast %90 : vector<17x8xf32> to vector<1x17x8xf32>
    %95 = tpu.concatenate %91, %92, %93, %94 in 0 : vector<1x17x8xf32>, vector<1x17x8xf32>, vector<1x17x8xf32>, vector<1x17x8xf32> -> vector<4x17x8xf32>
    %96 = arith.truncf %77 : vector<4x17x8xf32> to vector<4x17x8xbf16>
    %97 = arith.truncf %86 : vector<4x17x8xf32> to vector<4x17x8xbf16>
    "tpu.trace_start"() <{level = 10 : i32, message = "hqc,hmc->hqm"}> : () -> ()
    %cst_26 = arith.constant dense<0.000000e+00> : vector<4x17x17xf32>
    %98 = tpu.matmul %96, %97, %cst_26 {dimension_numbers = #tpu.dot_dimension_numbers<[2], [2], [1], [1], [0, 0, 0, 1, 1, 1], [0], [0]>} : vector<4x17x8xbf16>, vector<4x17x8xbf16>, vector<4x17x17xf32> -> vector<4x17x17xf32>
    "tpu.trace_stop"() : () -> ()
    %cst_27 = arith.constant dense<0xFF800000> : vector<4x17xf32>
    %99 = vector.multi_reduction <maximumf>, %98, %cst_27 [2] : vector<4x17x17xf32> to vector<4x17xf32>
    %100 = vector.shape_cast %99 : vector<4x17xf32> to vector<4x17x1xf32>
    %101 = vector.broadcast %100 : vector<4x17x1xf32> to vector<4x17x17xf32>
    %102 = arith.subf %98, %101 : vector<4x17x17xf32>
    %103 = math.exp %102 : vector<4x17x17xf32>
    %cst_28 = arith.constant dense<0.000000e+00> : vector<4x17xf32>
    %104 = vector.multi_reduction <add>, %103, %cst_28 [2] : vector<4x17x17xf32> to vector<4x17xf32>
    %105 = vector.shape_cast %104 : vector<4x17xf32> to vector<4x17x1xf32>
    %106 = tpu.reciprocal %105 {approx = true} : vector<4x17x1xf32> -> vector<4x17x1xf32>
    %107 = vector.broadcast %106 : vector<4x17x1xf32> to vector<4x17x17xf32>
    %108 = arith.mulf %103, %107 : vector<4x17x17xf32>
    %109 = arith.truncf %108 : vector<4x17x17xf32> to vector<4x17x17xbf16>
    %110 = arith.truncf %95 : vector<4x17x8xf32> to vector<4x17x8xbf16>
    "tpu.trace_start"() <{level = 10 : i32, message = "hqm,hmc->hqc"}> : () -> ()
    %cst_29 = arith.constant dense<0.000000e+00> : vector<4x17x8xf32>
    %111 = tpu.matmul %109, %110, %cst_29 {dimension_numbers = #tpu.dot_dimension_numbers<[2], [1], [1], [2], [0, 0, 0, 1, 1, 2], [0], [0]>} : vector<4x17x17xbf16>, vector<4x17x8xbf16>, vector<4x17x8xf32> -> vector<4x17x8xf32>
    "tpu.trace_stop"() : () -> ()
    %112 = vector.extract_strided_slice %111 {offsets = [0, 0, 0], sizes = [1, 17, 8], strides = [1, 1, 1]} : vector<4x17x8xf32> to vector<1x17x8xf32>
    %113 = vector.shape_cast %112 : vector<1x17x8xf32> to vector<17x8xf32>
    %114 = vector.extract_strided_slice %111 {offsets = [1, 0, 0], sizes = [1, 17, 8], strides = [1, 1, 1]} : vector<4x17x8xf32> to vector<1x17x8xf32>
    %115 = vector.shape_cast %114 : vector<1x17x8xf32> to vector<17x8xf32>
    %116 = vector.extract_strided_slice %111 {offsets = [2, 0, 0], sizes = [1, 17, 8], strides = [1, 1, 1]} : vector<4x17x8xf32> to vector<1x17x8xf32>
    %117 = vector.shape_cast %116 : vector<1x17x8xf32> to vector<17x8xf32>
    %118 = vector.extract_strided_slice %111 {offsets = [3, 0, 0], sizes = [1, 17, 8], strides = [1, 1, 1]} : vector<4x17x8xf32> to vector<1x17x8xf32>
    %119 = vector.shape_cast %118 : vector<1x17x8xf32> to vector<17x8xf32>
    %120 = tpu.concatenate %113, %115, %117, %119 in 1 : vector<17x8xf32>, vector<17x8xf32>, vector<17x8xf32>, vector<17x8xf32> -> vector<17x32xf32>
    %121 = arith.truncf %120 : vector<17x32xf32> to vector<17x32xbf16>
    %c0_30 = arith.constant 0 : index
    %c0_31 = arith.constant 0 : index
    %c0_32 = arith.constant 0 : index
    %122 = vector.load %arg8[%c0_30, %c0_31, %c0_32] : memref<1x32x32xbf16, #tpu.memory_space<vmem>>, vector<1x32x32xbf16>
    %123 = vector.shape_cast %122 : vector<1x32x32xbf16> to vector<32x32xbf16>
    %cst_33 = arith.constant dense<0.000000e+00> : vector<17x32xf32>
    %124 = tpu.matmul %121, %123, %cst_33 {dimension_numbers = #tpu.dot_dimension_numbers<[1], [0], [0], [1], [0, 0, 1, 1], [], []>} : vector<17x32xbf16>, vector<32x32xbf16>, vector<17x32xf32> -> vector<17x32xf32>
    %125 = arith.addf %34, %124 : vector<17x32xf32>
    %126 = vector.extract_strided_slice %5 {offsets = [4, 0], sizes = [1, 32], strides = [1, 1]} : vector<9x32xf32> to vector<1x32xf32>
    %127 = vector.broadcast %126 : vector<1x32xf32> to vector<17x32xf32>
    %128 = arith.addf %125, %127 : vector<17x32xf32>
    %129 = vector.extract_strided_slice %5 {offsets = [2, 0], sizes = [1, 32], strides = [1, 1]} : vector<9x32xf32> to vector<1x32xf32>
    %130 = vector.extract_strided_slice %5 {offsets = [3, 0], sizes = [1, 32], strides = [1, 1]} : vector<9x32xf32> to vector<1x32xf32>
    %cst_34 = arith.constant dense<0.000000e+00> : vector<17xf32>
    %131 = vector.multi_reduction <add>, %128, %cst_34 [1] : vector<17x32xf32> to vector<17xf32>
    %132 = vector.shape_cast %131 : vector<17xf32> to vector<17x1xf32>
    %cst_35 = arith.constant 3.200000e+01 : f32
    %133 = vector.broadcast %cst_35 : f32 to vector<17x1xf32>
    %134 = arith.divf %132, %133 : vector<17x1xf32>
    %135 = vector.broadcast %134 : vector<17x1xf32> to vector<17x32xf32>
    %136 = arith.subf %128, %135 : vector<17x32xf32>
    %137 = arith.mulf %136, %136 : vector<17x32xf32>
    %cst_36 = arith.constant dense<0.000000e+00> : vector<17xf32>
    %138 = vector.multi_reduction <add>, %137, %cst_36 [1] : vector<17x32xf32> to vector<17xf32>
    %139 = vector.shape_cast %138 : vector<17xf32> to vector<17x1xf32>
    %cst_37 = arith.constant 3.200000e+01 : f32
    %140 = vector.broadcast %cst_37 : f32 to vector<17x1xf32>
    %141 = arith.divf %139, %140 : vector<17x1xf32>
    %142 = vector.broadcast %134 : vector<17x1xf32> to vector<17x32xf32>
    %143 = arith.subf %128, %142 : vector<17x32xf32>
    %cst_38 = arith.constant 9.99999974E-6 : f32
    %144 = vector.broadcast %cst_38 : f32 to vector<17x1xf32>
    %145 = arith.addf %141, %144 : vector<17x1xf32>
    %146 = math.rsqrt %145 : vector<17x1xf32>
    %147 = vector.broadcast %146 : vector<17x1xf32> to vector<17x32xf32>
    %148 = arith.mulf %143, %147 : vector<17x32xf32>
    %149 = vector.broadcast %129 : vector<1x32xf32> to vector<17x32xf32>
    %150 = arith.mulf %148, %149 : vector<17x32xf32>
    %151 = vector.broadcast %130 : vector<1x32xf32> to vector<17x32xf32>
    %152 = arith.addf %150, %151 : vector<17x32xf32>
    %153 = arith.truncf %152 : vector<17x32xf32> to vector<17x32xbf16>
    %c0_39 = arith.constant 0 : index
    %c0_40 = arith.constant 0 : index
    %c0_41 = arith.constant 0 : index
    %154 = vector.load %arg9[%c0_39, %c0_40, %c0_41] : memref<1x32x128xbf16, #tpu.memory_space<vmem>>, vector<1x32x128xbf16>
    %155 = vector.shape_cast %154 : vector<1x32x128xbf16> to vector<32x128xbf16>
    %cst_42 = arith.constant dense<0.000000e+00> : vector<17x128xf32>
    %156 = tpu.matmul %153, %155, %cst_42 {dimension_numbers = #tpu.dot_dimension_numbers<[1], [0], [0], [1], [0, 0, 1, 1], [], []>} : vector<17x32xbf16>, vector<32x128xbf16>, vector<17x128xf32> -> vector<17x128xf32>
    %c0_43 = arith.constant 0 : index
    %c0_44 = arith.constant 0 : index
    %c0_45 = arith.constant 0 : index
    %157 = vector.load %arg10[%c0_43, %c0_44, %c0_45] : memref<1x1x128xf32, #tpu.memory_space<vmem>>, vector<1x1x128xf32>
    %158 = vector.shape_cast %157 : vector<1x1x128xf32> to vector<1x128xf32>
    %159 = vector.broadcast %158 : vector<1x128xf32> to vector<17x128xf32>
    %160 = arith.addf %156, %159 : vector<17x128xf32>
    %cst_46 = arith.constant 5.000000e-01 : f32
    %161 = vector.broadcast %cst_46 : f32 to vector<17x128xf32>
    %162 = arith.mulf %161, %160 : vector<17x128xf32>
    %cst_47 = arith.constant 4.471500e-02 : f32
    %163 = vector.broadcast %cst_47 : f32 to vector<17x128xf32>
    %164 = arith.mulf %163, %160 : vector<17x128xf32>
    %165 = arith.mulf %164, %160 : vector<17x128xf32>
    %166 = arith.mulf %165, %160 : vector<17x128xf32>
    %167 = arith.addf %160, %166 : vector<17x128xf32>
    %cst_48 = arith.constant 0.797884583 : f32
    %168 = vector.broadcast %cst_48 : f32 to vector<17x128xf32>
    %169 = arith.mulf %168, %167 : vector<17x128xf32>
    %170 = math.tanh %169 : vector<17x128xf32>
    %cst_49 = arith.constant 1.000000e+00 : f32
    %171 = vector.broadcast %cst_49 : f32 to vector<17x128xf32>
    %172 = arith.addf %171, %170 : vector<17x128xf32>
    %173 = arith.mulf %162, %172 : vector<17x128xf32>
    %174 = arith.truncf %173 : vector<17x128xf32> to vector<17x128xbf16>
    %c0_50 = arith.constant 0 : index
    %c0_51 = arith.constant 0 : index
    %c0_52 = arith.constant 0 : index
    %175 = vector.load %arg11[%c0_50, %c0_51, %c0_52] : memref<1x128x32xbf16, #tpu.memory_space<vmem>>, vector<1x128x32xbf16>
    %176 = vector.shape_cast %175 : vector<1x128x32xbf16> to vector<128x32xbf16>
    %cst_53 = arith.constant dense<0.000000e+00> : vector<17x32xf32>
    %177 = tpu.matmul %174, %176, %cst_53 {dimension_numbers = #tpu.dot_dimension_numbers<[1], [0], [0], [1], [0, 0, 1, 1], [], []>} : vector<17x128xbf16>, vector<128x32xbf16>, vector<17x32xf32> -> vector<17x32xf32>
    %178 = arith.addf %128, %177 : vector<17x32xf32>
    %179 = vector.extract_strided_slice %5 {offsets = [5, 0], sizes = [1, 32], strides = [1, 1]} : vector<9x32xf32> to vector<1x32xf32>
    %180 = vector.broadcast %179 : vector<1x32xf32> to vector<17x32xf32>
    %181 = arith.addf %178, %180 : vector<17x32xf32>
    %c0_54 = arith.constant 0 : index
    %c0_55 = arith.constant 0 : index
    %182 = vector.load %arg17[%c0_54, %c0_55] : memref<17x32xf32, #tpu.memory_space<vmem>>, vector<17x32xf32>
    tpu.vector_store %arg17[%c0_54, %c0_55], %181 {strides = array<i32>} : memref<17x32xf32, #tpu.memory_space<vmem>>, vector<17x32xf32>,
    %c1_i32 = arith.constant 1 : i32
    %183 = arith.cmpi eq, %arg1, %c1_i32 : i32
    %184 = arith.extui %183 : i1 to i32
    %c0_i32_56 = arith.constant 0 : i32
    %185 = arith.cmpi ne, %184, %c0_i32_56 : i32
    scf.if %185 {
      %c0_57 = arith.constant 0 : index
      %c0_58 = arith.constant 0 : index
      %186 = vector.load %arg13[%c0_57, %c0_58] : memref<2x32xf32, #tpu.memory_space<vmem>>, vector<2x32xf32>
      %187 = vector.extract_strided_slice %181 {offsets = [0, 0], sizes = [1, 32], strides = [1, 1]} : vector<17x32xf32> to vector<1x32xf32>
      %188 = vector.extract_strided_slice %186 {offsets = [0, 0], sizes = [1, 32], strides = [1, 1]} : vector<2x32xf32> to vector<1x32xf32>
      %189 = vector.extract_strided_slice %186 {offsets = [1, 0], sizes = [1, 32], strides = [1, 1]} : vector<2x32xf32> to vector<1x32xf32>
      %cst_59 = arith.constant dense<0.000000e+00> : vector<1xf32>
      %190 = vector.multi_reduction <add>, %187, %cst_59 [1] : vector<1x32xf32> to vector<1xf32>
      %191 = vector.shape_cast %190 : vector<1xf32> to vector<1x1xf32>
      %cst_60 = arith.constant 3.200000e+01 : f32
      %192 = vector.broadcast %cst_60 : f32 to vector<1x1xf32>
      %193 = arith.divf %191, %192 : vector<1x1xf32>
      %194 = vector.broadcast %193 : vector<1x1xf32> to vector<1x32xf32>
      %195 = arith.subf %187, %194 : vector<1x32xf32>
      %196 = arith.mulf %195, %195 : vector<1x32xf32>
      %cst_61 = arith.constant dense<0.000000e+00> : vector<1xf32>
      %197 = vector.multi_reduction <add>, %196, %cst_61 [1] : vector<1x32xf32> to vector<1xf32>
      %198 = vector.shape_cast %197 : vector<1xf32> to vector<1x1xf32>
      %cst_62 = arith.constant 3.200000e+01 : f32
      %199 = vector.broadcast %cst_62 : f32 to vector<1x1xf32>
      %200 = arith.divf %198, %199 : vector<1x1xf32>
      %201 = vector.broadcast %193 : vector<1x1xf32> to vector<1x32xf32>
      %202 = arith.subf %187, %201 : vector<1x32xf32>
      %cst_63 = arith.constant 9.99999974E-6 : f32
      %203 = vector.broadcast %cst_63 : f32 to vector<1x1xf32>
      %204 = arith.addf %200, %203 : vector<1x1xf32>
      %205 = math.rsqrt %204 : vector<1x1xf32>
      %206 = vector.broadcast %205 : vector<1x1xf32> to vector<1x32xf32>
      %207 = arith.mulf %202, %206 : vector<1x32xf32>
      %208 = arith.mulf %207, %188 : vector<1x32xf32>
      %209 = arith.addf %208, %189 : vector<1x32xf32>
      %210 = arith.truncf %209 : vector<1x32xf32> to vector<1x32xbf16>
      %c0_64 = arith.constant 0 : index
      %c0_65 = arith.constant 0 : index
      %211 = vector.load %arg14[%c0_64, %c0_65] : memref<32x2xbf16, #tpu.memory_space<vmem>>, vector<32x2xbf16>
      %cst_66 = arith.constant dense<0.000000e+00> : vector<1x2xf32>
      %212 = tpu.matmul %210, %211, %cst_66 {dimension_numbers = #tpu.dot_dimension_numbers<[1], [0], [0], [1], [0, 0, 1, 1], [], []>} : vector<1x32xbf16>, vector<32x2xbf16>, vector<1x2xf32> -> vector<1x2xf32>
      %c0_67 = arith.constant 0 : index
      %c0_68 = arith.constant 0 : index
      %213 = vector.load %arg15[%c0_67, %c0_68] : memref<1x2xf32, #tpu.memory_space<vmem>>, vector<1x2xf32>
      %214 = arith.addf %212, %213 : vector<1x2xf32>
      %c0_69 = arith.constant 0 : index
      %c0_70 = arith.constant 0 : index
      %c0_71 = arith.constant 0 : index
      %215 = vector.load %arg16[%c0_69, %c0_70, %c0_71] : memref<1x1x2xf32, #tpu.memory_space<vmem>>, vector<1x1x2xf32>
      %216 = vector.shape_cast %215 : vector<1x1x2xf32> to vector<1x2xf32>
      %217 = vector.shape_cast %214 : vector<1x2xf32> to vector<1x1x2xf32>
      tpu.vector_store %arg16[%c0_69, %c0_70, %c0_71], %217 {strides = array<i32>} : memref<1x1x2xf32, #tpu.memory_space<vmem>>, vector<1x1x2xf32>,
    } else {
    }
    return
  }
  func.func @transform_0(%arg0: i32, %arg1: i32) -> (i32, i32, i32) {
    %c0_i32 = arith.constant 0 : i32
    %c0_i32_0 = arith.constant 0 : i32
    %c0_i32_1 = arith.constant 0 : i32
    return %arg0, %c0_i32, %c0_i32_0 : i32, i32, i32
  }
  func.func @transform_1(%arg0: i32, %arg1: i32) -> (i32, i32) {
    %c0_i32 = arith.constant 0 : i32
    %c0_i32_0 = arith.constant 0 : i32
    %c0_i32_1 = arith.constant 0 : i32
    return %c0_i32, %c0_i32_0 : i32, i32
  }
  func.func @transform_2(%arg0: i32, %arg1: i32) -> (i32, i32) {
    %c0_i32 = arith.constant 0 : i32
    %c0_i32_0 = arith.constant 0 : i32
    %c0_i32_1 = arith.constant 0 : i32
    return %c0_i32, %c0_i32_0 : i32, i32
  }
  func.func @transform_3(%arg0: i32, %arg1: i32) -> (i32, i32, i32) {
    %c0_i32 = arith.constant 0 : i32
    %c0_i32_0 = arith.constant 0 : i32
    %c0_i32_1 = arith.constant 0 : i32
    return %arg1, %c0_i32, %c0_i32_0 : i32, i32, i32
  }
  func.func @transform_4(%arg0: i32, %arg1: i32) -> (i32, i32, i32) {
    %c0_i32 = arith.constant 0 : i32
    %c0_i32_0 = arith.constant 0 : i32
    %c0_i32_1 = arith.constant 0 : i32
    return %arg1, %c0_i32, %c0_i32_0 : i32, i32, i32
  }
  func.func @transform_5(%arg0: i32, %arg1: i32) -> (i32, i32, i32) {
    %c0_i32 = arith.constant 0 : i32
    %c0_i32_0 = arith.constant 0 : i32
    %c0_i32_1 = arith.constant 0 : i32
    return %arg1, %c0_i32, %c0_i32_0 : i32, i32, i32
  }
  func.func @transform_6(%arg0: i32, %arg1: i32) -> (i32, i32, i32) {
    %c0_i32 = arith.constant 0 : i32
    %c0_i32_0 = arith.constant 0 : i32
    %c0_i32_1 = arith.constant 0 : i32
    return %arg1, %c0_i32, %c0_i32_0 : i32, i32, i32
  }
  func.func @transform_7(%arg0: i32, %arg1: i32) -> (i32, i32, i32) {
    %c0_i32 = arith.constant 0 : i32
    %c0_i32_0 = arith.constant 0 : i32
    %c0_i32_1 = arith.constant 0 : i32
    return %arg1, %c0_i32, %c0_i32_0 : i32, i32, i32
  }
  func.func @transform_8(%arg0: i32, %arg1: i32) -> (i32, i32, i32) {
    %c0_i32 = arith.constant 0 : i32
    %c0_i32_0 = arith.constant 0 : i32
    %c0_i32_1 = arith.constant 0 : i32
    return %arg1, %c0_i32, %c0_i32_0 : i32, i32, i32
  }
  func.func @transform_9(%arg0: i32, %arg1: i32) -> (i32, i32, i32) {
    %c0_i32 = arith.constant 0 : i32
    %c0_i32_0 = arith.constant 0 : i32
    %c0_i32_1 = arith.constant 0 : i32
    return %arg1, %c0_i32, %c0_i32_0 : i32, i32, i32
  }
  func.func @transform_10(%arg0: i32, %arg1: i32) -> (i32, i32, i32) {
    %c0_i32 = arith.constant 0 : i32
    %c0_i32_0 = arith.constant 0 : i32
    %c0_i32_1 = arith.constant 0 : i32
    return %arg1, %c0_i32, %c0_i32_0 : i32, i32, i32
  }
  func.func @transform_11(%arg0: i32, %arg1: i32) -> (i32, i32) {
    %c0_i32 = arith.constant 0 : i32
    %c0_i32_0 = arith.constant 0 : i32
    %c0_i32_1 = arith.constant 0 : i32
    return %c0_i32, %c0_i32_0 : i32, i32
  }
  func.func @transform_12(%arg0: i32, %arg1: i32) -> (i32, i32) {
    %c0_i32 = arith.constant 0 : i32
    %c0_i32_0 = arith.constant 0 : i32
    %c0_i32_1 = arith.constant 0 : i32
    return %c0_i32, %c0_i32_0 : i32, i32
  }
  func.func @transform_13(%arg0: i32, %arg1: i32) -> (i32, i32) {
    %c0_i32 = arith.constant 0 : i32
    %c0_i32_0 = arith.constant 0 : i32
    %c0_i32_1 = arith.constant 0 : i32
    return %c0_i32, %c0_i32_0 : i32, i32
  }
  func.func @transform_14(%arg0: i32, %arg1: i32) -> (i32, i32, i32) {
    %c0_i32 = arith.constant 0 : i32
    %c0_i32_0 = arith.constant 0 : i32
    %c0_i32_1 = arith.constant 0 : i32
    return %arg0, %c0_i32, %c0_i32_0 : i32, i32, i32
  }
}

</mosaic_0001>

<llo_original>
// kernel: se_vit_forward.1
$region0: #{se_vit_forward.1}
  #allocation0 [shape = 'u32[]', space=smem, size = 0x4, offset = 0x4, fixed_abs, tag = 'smem constant byte address 0x4 - core index']
  #allocation1 [shape = 'u32[144,128]{1,0:T(1,128)}', space=vmem, size = 0x12000, scoped, tag = 'internal scratch']
  #allocation2 [shape = 'f32[17,32]{1,0:T(8,128)}', space=vmem, size = 0x3000, scoped, tag = 'scratch operand']
  %s0 = inlined_call_operand.vmem [shape: bf16[2,17,64], index: 0, kind: input, shape index: {}]
  %s1 = inlined_call_operand.vmem [shape: bf16[64,32], index: 1, kind: input, shape index: {}]
  %s2 = inlined_call_operand.vmem [shape: f32[17,32], index: 2, kind: input, shape index: {}]
  %s3 = inlined_call_operand.vmem [shape: bf16[2,32,2], index: 3, kind: input, shape index: {}]
  %s4 = inlined_call_operand.vmem [shape: bf16[2,32,96], index: 4, kind: input, shape index: {}]
  %s5 = inlined_call_operand.vmem [shape: f32[2,1,96], index: 5, kind: input, shape index: {}]
  %s6 = inlined_call_operand.vmem [shape: bf16[2,32,32], index: 6, kind: input, shape index: {}]
  %s7 = inlined_call_operand.vmem [shape: bf16[2,32,128], index: 7, kind: input, shape index: {}]
  %s8 = inlined_call_operand.vmem [shape: f32[2,1,128], index: 8, kind: input, shape index: {}]
  %s9 = inlined_call_operand.vmem [shape: bf16[2,128,32], index: 9, kind: input, shape index: {}]
  %s10 = inlined_call_operand.vmem [shape: f32[2,9,32], index: 10, kind: input, shape index: {}]
  %s11 = inlined_call_operand.vmem [shape: f32[2,32], index: 11, kind: input, shape index: {}]
  %s12 = inlined_call_operand.vmem [shape: bf16[32,2], index: 12, kind: input, shape index: {}]
  %s13 = inlined_call_operand.vmem [shape: f32[1,2], index: 13, kind: input, shape index: {}]
  %s14 = inlined_call_operand.hbm [shape: f32[2,1,2], index: 14, kind: output, shape index: {}]
  %s15 = sld [smem:[#allocation0]]
  $region97: #{se_vit_forward.1} parent=0
    _
  %s17 = ssub.s32 1, %s15
  %s18 = scalar_select 0, %s17, %s15
  $region1: #{se_vit_forward.1} parent=0
    #allocation3 [shape = 'u8[1024]{0}', space=vmem, size = 0x400, scoped, tag = 'output window, operand 0']
    #allocation4 [shape = 's32[2]{0}', space=sflag, size = 0x8, scoped, tag = 'scoped memory for se_vit_forward.1']
    %19 = vsyncpa [#allocation4], 0
    %s20 = scalar_lea.sflag [#allocation4], 1
    %21 = vsyncpa %s20, 0
    loop: start=0, step=1, limit=6
    $region2: #{se_vit_forward.1} parent=1 // loop_pre_header
      _
    $region3: #{se_vit_forward.1} parent=1 // loop_header
      %s23 = sphi 0, %s27
      %p24 = scmp.ge.s32.totalorder %s23, 6
      %s30 = sphi 0, %s42
      %s31 = sphi 0, %s38
      %s32 = sphi 0, %s30
      %s33 = sphi 0, %s31
      %s34 = sphi 0, %s32
      %s35 = sphi 0, %s33
      %s45 = sphi 0, %s47
      %s48 = sphi 0, %s45
      %s49 = sphi 0, %s48
      %s65 = sphi 0, %s49
      %s69 = sphi 0, %s69
      %s71 = sphi 0, %s69
      %s72 = sphi 0, %s71
      %s86 = sphi 0, %s72
      %s90 = sphi 0, %s90
      %s92 = sphi 0, %s90
      %s93 = sphi 0, %s92
      %s107 = sphi 0, %s93
      %s113 = sphi 0, %s115
      %s116 = sphi 0, %s113
      %s117 = sphi 0, %s116
      %s133 = sphi 0, %s117
      %s139 = sphi 0, %s141
      %s142 = sphi 0, %s139
      %s143 = sphi 0, %s142
      %s159 = sphi 0, %s143
      %s165 = sphi 0, %s167
      %s168 = sphi 0, %s165
      %s169 = sphi 0, %s168
      %s185 = sphi 0, %s169
      %s191 = sphi 0, %s193
      %s194 = sphi 0, %s191
      %s195 = sphi 0, %s194
      %s211 = sphi 0, %s195
      %s217 = sphi 0, %s219
      %s220 = sphi 0, %s217
      %s221 = sphi 0, %s220
      %s237 = sphi 0, %s221
      %s243 = sphi 0, %s245
      %s246 = sphi 0, %s243
      %s247 = sphi 0, %s246
      %s263 = sphi 0, %s247
      %s269 = sphi 0, %s271
      %s272 = sphi 0, %s269
      %s273 = sphi 0, %s272
      %s289 = sphi 0, %s273
      %s295 = sphi 0, %s297
      %s298 = sphi 0, %s295
      %s299 = sphi 0, %s298
      %s315 = sphi 0, %s299
      %s319 = sphi 0, %s319
      %s321 = sphi 0, %s319
      %s322 = sphi 0, %s321
      %s336 = sphi 0, %s322
      %s340 = sphi 0, %s340
      %s342 = sphi 0, %s340
      %s343 = sphi 0, %s342
      %s357 = sphi 0, %s343
      %s361 = sphi 0, %s361
      %s363 = sphi 0, %s361
      %s364 = sphi 0, %s363
      %s378 = sphi 0, %s364
      %s384 = sphi 0, %s386
      %s387 = sphi 0, %s384
      %s388 = sphi 0, %s387
      %s404 = sphi 0, %s388
    $region4: #{se_vit_forward.1} parent=1 // loop_header_branch
      %26 = sbr.rel (%p24) target = $region8
    $region5: #{se_vit_forward.1} parent=1 // loop_body
      %s28 = ssub.s32 %s23, 1
      %s29 = ssub.s32 %s23, 2
      %s36 = sadd.s32 1, %s31
      %p37 = scmp.ge.s32.totalorder %s36, 2
      %s38 = scalar_select %p37, 0, %s36
      %s39 = sadd.s32 1, %s30
      %s40 = scalar_select %p37, %s39, %s30
      %p41 = scmp.ge.s32.totalorder %s40, 2
      %s42 = scalar_select %p41, 0, %s40
      %s43 = ssub.s32 %s30, %s42
      %p44 = scmp.eq.s32.totalorder %s43, 0
      %s46 = sadd.s32 %s45, 1
      %s47 = scalar_select %p44, %s45, %s46
      %p50 = pneg %p44
      %p51 = scmp.eq.s32.totalorder %s23, 3
      %p52 = por %p50, %p51
      %p53 = scmp.ne.s32.totalorder %s45, %s48
      %p54 = scmp.eq.s32.totalorder %s23, 0
      %p55 = por %p53, %p54
      %p56 = scmp.ne.s32.totalorder %s45, %s48
      %p57 = scmp.eq.s32.totalorder %s28, 3
      %p58 = por %p56, %p57
      %p59 = scmp.ne.s32.totalorder %s48, %s49
      %p60 = scmp.eq.s32.totalorder %s28, 0
      %p61 = por %p59, %p60
      %p62 = scmp.ne.s32.totalorder %s48, %s49
      %p63 = scmp.eq.s32.totalorder %s29, 3
      %p64 = por %p62, %p63
      %p66 = scmp.ne.s32.totalorder %s49, %s65
      %p67 = scmp.eq.s32.totalorder %s29, 0
      %p68 = por %p66, %p67
      %s70 = sadd.s32 %s69, 1
      %p73 = scmp.eq.s32.totalorder %s23, 3
      %p74 = scmp.ne.s32.totalorder %s69, %s71
      %p75 = scmp.eq.s32.totalorder %s23, 0
      %p76 = por %p74, %p75
      %p77 = scmp.ne.s32.totalorder %s69, %s71
      %p78 = scmp.eq.s32.totalorder %s28, 3
      %p79 = por %p77, %p78
      %p80 = scmp.ne.s32.totalorder %s71, %s72
      %p81 = scmp.eq.s32.totalorder %s28, 0
      %p82 = por %p80, %p81
      %p83 = scmp.ne.s32.totalorder %s71, %s72
      %p84 = scmp.eq.s32.totalorder %s29, 3
      %p85 = por %p83, %p84
      %p87 = scmp.ne.s32.totalorder %s72, %s86
      %p88 = scmp.eq.s32.totalorder %s29, 0
      %p89 = por %p87, %p88
      %s91 = sadd.s32 %s90, 1
      %p94 = scmp.eq.s32.totalorder %s23, 3
      %p95 = scmp.ne.s32.totalorder %s90, %s92
      %p96 = scmp.eq.s32.totalorder %s23, 0
      %p97 = por %p95, %p96
      %p98 = scmp.ne.s32.totalorder %s90, %s92
      %p99 = scmp.eq.s32.totalorder %s28, 3
      %p100 = por %p98, %p99
      %p101 = scmp.ne.s32.totalorder %s92, %s93
      %p102 = scmp.eq.s32.totalorder %s28, 0
      %p103 = por %p101, %p102
      %p104 = scmp.ne.s32.totalorder %s92, %s93
      %p105 = scmp.eq.s32.totalorder %s29, 3
      %p106 = por %p104, %p105
      %p108 = scmp.ne.s32.totalorder %s93, %s107
      %p109 = scmp.eq.s32.totalorder %s29, 0
      %p110 = por %p108, %p109
      %s111 = ssub.s32 %s31, %s38
      %p112 = scmp.eq.s32.totalorder %s111, 0
      %s114 = sadd.s32 %s113, 1
      %s115 = scalar_select %p112, %s113, %s114
      %p118 = pneg %p112
      %p119 = scmp.eq.s32.totalorder %s23, 3
      %p120 = por %p118, %p119
      %p121 = scmp.ne.s32.totalorder %s113, %s116
      %p122 = scmp.eq.s32.totalorder %s23, 0
      %p123 = por %p121, %p122
      %p124 = scmp.ne.s32.totalorder %s113, %s116
      %p125 = scmp.eq.s32.totalorder %s28, 3
      %p126 = por %p124, %p125
      %p127 = scmp.ne.s32.totalorder %s116, %s117
      %p128 = scmp.eq.s32.totalorder %s28, 0
      %p129 = por %p127, %p128
      %p130 = scmp.ne.s32.totalorder %s116, %s117
      %p131 = scmp.eq.s32.totalorder %s29, 3
      %p132 = por %p130, %p131
      %p134 = scmp.ne.s32.totalorder %s117, %s133
      %p135 = scmp.eq.s32.totalorder %s29, 0
      %p136 = por %p134, %p135
      %s137 = ssub.s32 %s31, %s38
      %p138 = scmp.eq.s32.totalorder %s137, 0
      %s140 = sadd.s32 %s139, 1
      %s141 = scalar_select %p138, %s139, %s140
      %p144 = pneg %p138
      %p145 = scmp.eq.s32.totalorder %s23, 3
      %p146 = por %p144, %p145
      %p147 = scmp.ne.s32.totalorder %s139, %s142
      %p148 = scmp.eq.s32.totalorder %s23, 0
      %p149 = por %p147, %p148
      %p150 = scmp.ne.s32.totalorder %s139, %s142
      %p151 = scmp.eq.s32.totalorder %s28, 3
      %p152 = por %p150, %p151
      %p153 = scmp.ne.s32.totalorder %s142, %s143
      %p154 = scmp.eq.s32.totalorder %s28, 0
      %p155 = por %p153, %p154
      %p156 = scmp.ne.s32.totalorder %s142, %s143
      %p157 = scmp.eq.s32.totalorder %s29, 3
      %p158 = por %p156, %p157
      %p160 = scmp.ne.s32.totalorder %s143, %s159
      %p161 = scmp.eq.s32.totalorder %s29, 0
      %p162 = por %p160, %p161
      %s163 = ssub.s32 %s31, %s38
      %p164 = scmp.eq.s32.totalorder %s163, 0
      %s166 = sadd.s32 %s165, 1
      %s167 = scalar_select %p164, %s165, %s166
      %p170 = pneg %p164
      %p171 = scmp.eq.s32.totalorder %s23, 3
      %p172 = por %p170, %p171
      %p173 = scmp.ne.s32.totalorder %s165, %s168
      %p174 = scmp.eq.s32.totalorder %s23, 0
      %p175 = por %p173, %p174
      %p176 = scmp.ne.s32.totalorder %s165, %s168
      %p177 = scmp.eq.s32.totalorder %s28, 3
      %p178 = por %p176, %p177
      %p179 = scmp.ne.s32.totalorder %s168, %s169
      %p180 = scmp.eq.s32.totalorder %s28, 0
      %p181 = por %p179, %p180
      %p182 = scmp.ne.s32.totalorder %s168, %s169
      %p183 = scmp.eq.s32.totalorder %s29, 3
      %p184 = por %p182, %p183
      %p186 = scmp.ne.s32.totalorder %s169, %s185
      %p187 = scmp.eq.s32.totalorder %s29, 0
      %p188 = por %p186, %p187
      %s189 = ssub.s32 %s31, %s38
      %p190 = scmp.eq.s32.totalorder %s189, 0
      %s192 = sadd.s32 %s191, 1
      %s193 = scalar_select %p190, %s191, %s192
      %p196 = pneg %p190
      %p197 = scmp.eq.s32.totalorder %s23, 3
      %p198 = por %p196, %p197
      %p199 = scmp.ne.s32.totalorder %s191, %s194
      %p200 = scmp.eq.s32.totalorder %s23, 0
      %p201 = por %p199, %p200
      %p202 = scmp.ne.s32.totalorder %s191, %s194
      %p203 = scmp.eq.s32.totalorder %s28, 3
      %p204 = por %p202, %p203
      %p205 = scmp.ne.s32.totalorder %s194, %s195
      %p206 = scmp.eq.s32.totalorder %s28, 0
      %p207 = por %p205, %p206
      %p208 = scmp.ne.s32.totalorder %s194, %s195
      %p209 = scmp.eq.s32.totalorder %s29, 3
      %p210 = por %p208, %p209
      %p212 = scmp.ne.s32.totalorder %s195, %s211
      %p213 = scmp.eq.s32.totalorder %s29, 0
      %p214 = por %p212, %p213
      %s215 = ssub.s32 %s31, %s38
      %p216 = scmp.eq.s32.totalorder %s215, 0
      %s218 = sadd.s32 %s217, 1
      %s219 = scalar_select %p216, %s217, %s218
      %p222 = pneg %p216
      %p223 = scmp.eq.s32.totalorder %s23, 3
      %p224 = por %p222, %p223
      %p225 = scmp.ne.s32.totalorder %s217, %s220
      %p226 = scmp.eq.s32.totalorder %s23, 0
      %p227 = por %p225, %p226
      %p228 = scmp.ne.s32.totalorder %s217, %s220
      %p229 = scmp.eq.s32.totalorder %s28, 3
      %p230 = por %p228, %p229
      %p231 = scmp.ne.s32.totalorder %s220, %s221
      %p232 = scmp.eq.s32.totalorder %s28, 0
      %p233 = por %p231, %p232
      %p234 = scmp.ne.s32.totalorder %s220, %s221
      %p235 = scmp.eq.s32.totalorder %s29, 3
      %p236 = por %p234, %p235
      %p238 = scmp.ne.s32.totalorder %s221, %s237
      %p239 = scmp.eq.s32.totalorder %s29, 0
      %p240 = por %p238, %p239
      %s241 = ssub.s32 %s31, %s38
      %p242 = scmp.eq.s32.totalorder %s241, 0
      %s244 = sadd.s32 %s243, 1
      %s245 = scalar_select %p242, %s243, %s244
      %p248 = pneg %p242
      %p249 = scmp.eq.s32.totalorder %s23, 3
      %p250 = por %p248, %p249
      %p251 = scmp.ne.s32.totalorder %s243, %s246
      %p252 = scmp.eq.s32.totalorder %s23, 0
      %p253 = por %p251, %p252
      %p254 = scmp.ne.s32.totalorder %s243, %s246
      %p255 = scmp.eq.s32.totalorder %s28, 3
      %p256 = por %p254, %p255
      %p257 = scmp.ne.s32.totalorder %s246, %s247
      %p258 = scmp.eq.s32.totalorder %s28, 0
      %p259 = por %p257, %p258
      %p260 = scmp.ne.s32.totalorder %s246, %s247
      %p261 = scmp.eq.s32.totalorder %s29, 3
      %p262 = por %p260, %p261
      %p264 = scmp.ne.s32.totalorder %s247, %s263
      %p265 = scmp.eq.s32.totalorder %s29, 0
      %p266 = por %p264, %p265
      %s267 = ssub.s32 %s31, %s38
      %p268 = scmp.eq.s32.totalorder %s267, 0
      %s270 = sadd.s32 %s269, 1
      %s271 = scalar_select %p268, %s269, %s270
      %p274 = pneg %p268
      %p275 = scmp.eq.s32.totalorder %s23, 3
      %p276 = por %p274, %p275
      %p277 = scmp.ne.s32.totalorder %s269, %s272
      %p278 = scmp.eq.s32.totalorder %s23, 0
      %p279 = por %p277, %p278
      %p280 = scmp.ne.s32.totalorder %s269, %s272
      %p281 = scmp.eq.s32.totalorder %s28, 3
      %p282 = por %p280, %p281
      %p283 = scmp.ne.s32.totalorder %s272, %s273
      %p284 = scmp.eq.s32.totalorder %s28, 0
      %p285 = por %p283, %p284
      %p286 = scmp.ne.s32.totalorder %s272, %s273
      %p287 = scmp.eq.s32.totalorder %s29, 3
      %p288 = por %p286, %p287
      %p290 = scmp.ne.s32.totalorder %s273, %s289
      %p291 = scmp.eq.s32.totalorder %s29, 0
      %p292 = por %p290, %p291
      %s293 = ssub.s32 %s31, %s38
      %p294 = scmp.eq.s32.totalorder %s293, 0
      %s296 = sadd.s32 %s295, 1
      %s297 = scalar_select %p294, %s295, %s296
      %p300 = pneg %p294
      %p301 = scmp.eq.s32.totalorder %s23, 3
      %p302 = por %p300, %p301
      %p303 = scmp.ne.s32.totalorder %s295, %s298
      %p304 = scmp.eq.s32.totalorder %s23, 0
      %p305 = por %p303, %p304
      %p306 = scmp.ne.s32.totalorder %s295, %s298
      %p307 = scmp.eq.s32.totalorder %s28, 3
      %p308 = por %p306, %p307
      %p309 = scmp.ne.s32.totalorder %s298, %s299
      %p310 = scmp.eq.s32.totalorder %s28, 0
      %p311 = por %p309, %p310
      %p312 = scmp.ne.s32.totalorder %s298, %s299
      %p313 = scmp.eq.s32.totalorder %s29, 3
      %p314 = por %p312, %p313
      %p316 = scmp.ne.s32.totalorder %s299, %s315
      %p317 = scmp.eq.s32.totalorder %s29, 0
      %p318 = por %p316, %p317
      %s320 = sadd.s32 %s319, 1
      %p323 = scmp.eq.s32.totalorder %s23, 3
      %p324 = scmp.ne.s32.totalorder %s319, %s321
      %p325 = scmp.eq.s32.totalorder %s23, 0
      %p326 = por %p324, %p325
      %p327 = scmp.ne.s32.totalorder %s319, %s321
      %p328 = scmp.eq.s32.totalorder %s28, 3
      %p329 = por %p327, %p328
      %p330 = scmp.ne.s32.totalorder %s321, %s322
      %p331 = scmp.eq.s32.totalorder %s28, 0
      %p332 = por %p330, %p331
      %p333 = scmp.ne.s32.totalorder %s321, %s322
      %p334 = scmp.eq.s32.totalorder %s29, 3
      %p335 = por %p333, %p334
      %p337 = scmp.ne.s32.totalorder %s322, %s336
      %p338 = scmp.eq.s32.totalorder %s29, 0
      %p339 = por %p337, %p338
      %s341 = sadd.s32 %s340, 1
      %p344 = scmp.eq.s32.totalorder %s23, 3
      %p345 = scmp.ne.s32.totalorder %s340, %s342
      %p346 = scmp.eq.s32.totalorder %s23, 0
      %p347 = por %p345, %p346
      %p348 = scmp.ne.s32.totalorder %s340, %s342
      %p349 = scmp.eq.s32.totalorder %s28, 3
      %p350 = por %p348, %p349
      %p351 = scmp.ne.s32.totalorder %s342, %s343
      %p352 = scmp.eq.s32.totalorder %s28, 0
      %p353 = por %p351, %p352
      %p354 = scmp.ne.s32.totalorder %s342, %s343
      %p355 = scmp.eq.s32.totalorder %s29, 3
      %p356 = por %p354, %p355
      %p358 = scmp.ne.s32.totalorder %s343, %s357
      %p359 = scmp.eq.s32.totalorder %s29, 0
      %p360 = por %p358, %p359
      %s362 = sadd.s32 %s361, 1
      %p365 = scmp.eq.s32.totalorder %s23, 3
      %p366 = scmp.ne.s32.totalorder %s361, %s363
      %p367 = scmp.eq.s32.totalorder %s23, 0
      %p368 = por %p366, %p367
      %p369 = scmp.ne.s32.totalorder %s361, %s363
      %p370 = scmp.eq.s32.totalorder %s28, 3
      %p371 = por %p369, %p370
      %p372 = scmp.ne.s32.totalorder %s363, %s364
      %p373 = scmp.eq.s32.totalorder %s28, 0
      %p374 = por %p372, %p373
      %p375 = scmp.ne.s32.totalorder %s363, %s364
      %p376 = scmp.eq.s32.totalorder %s29, 3
      %p377 = por %p375, %p376
      %p379 = scmp.ne.s32.totalorder %s364, %s378
      %p380 = scmp.eq.s32.totalorder %s29, 0
      %p381 = por %p379, %p380
      %s382 = ssub.s32 %s30, %s42
      %p383 = scmp.eq.s32.totalorder %s382, 0
      %s385 = sadd.s32 %s384, 1
      %s386 = scalar_select %p383, %s384, %s385
      %p389 = pneg %p383
      %p390 = scmp.eq.s32.totalorder %s23, 3
      %p391 = por %p389, %p390
      %p392 = scmp.ne.s32.totalorder %s384, %s387
      %p393 = scmp.eq.s32.totalorder %s23, 0
      %p394 = por %p392, %p393
      %p395 = scmp.ne.s32.totalorder %s384, %s387
      %p396 = scmp.eq.s32.totalorder %s28, 3
      %p397 = por %p395, %p396
      %p398 = scmp.ne.s32.totalorder %s387, %s388
      %p399 = scmp.eq.s32.totalorder %s28, 0
      %p400 = por %p398, %p399
      %p401 = scmp.ne.s32.totalorder %s387, %s388
      %p402 = scmp.eq.s32.totalorder %s29, 3
      %p403 = por %p401, %p402
      %p405 = scmp.ne.s32.totalorder %s388, %s404
      %p406 = scmp.eq.s32.totalorder %s29, 0
      %p407 = por %p405, %p406
      %p408 = scmp.le.s32.totalorder 1, %s23
      %p409 = scmp.lt.s32.totalorder %s23, 5
      %p410 = pnand %p408, %p409
      %p411 = pneg %p410
      // Predicated region
      $region9: #{se_vit_forward.1} parent=5 // pred_check
        _
      $region10: #{se_vit_forward.1} parent=5 // pred_check_branch
        %413 = sbr.rel (%p410) target = $region12
      $region11: #{se_vit_forward.1} parent=5 // pred_region
        %s414 = ssub.s32 %s23, 1
        // Predicated region
        $region13: #{se_vit_forward.1} parent=11 // pred_check
          %p415 = pneg %p82
        $region14: #{se_vit_forward.1} parent=11 // pred_check_branch
          %417 = sbr.rel (%p415) target = $region16
        $region15: #{se_vit_forward.1} parent=11 // pred_region
          _
        $region16: #{se_vit_forward.1} parent=11 // pred_fallthru
          _
        // Predicated region
        $region17: #{se_vit_forward.1} parent=11 // pred_check
          %p418 = pneg %p103
        $region18: #{se_vit_forward.1} parent=11 // pred_check_branch
          %420 = sbr.rel (%p418) target = $region20
        $region19: #{se_vit_forward.1} parent=11 // pred_region
          _
        $region20: #{se_vit_forward.1} parent=11 // pred_fallthru
          _
        // Predicated region
        $region21: #{se_vit_forward.1} parent=11 // pred_check
          %p421 = pneg %p332
        $region22: #{se_vit_forward.1} parent=11 // pred_check_branch
          %423 = sbr.rel (%p421) target = $region24
        $region23: #{se_vit_forward.1} parent=11 // pred_region
          _
        $region24: #{se_vit_forward.1} parent=11 // pred_fallthru
          _
        // Predicated region
        $region25: #{se_vit_forward.1} parent=11 // pred_check
          %p424 = pneg %p353
        $region26: #{se_vit_forward.1} parent=11 // pred_check_branch
          %426 = sbr.rel (%p424) target = $region28
        $region27: #{se_vit_forward.1} parent=11 // pred_region
          _
        $region28: #{se_vit_forward.1} parent=11 // pred_fallthru
          _
        // Predicated region
        $region29: #{se_vit_forward.1} parent=11 // pred_check
          %p427 = pneg %p374
        $region30: #{se_vit_forward.1} parent=11 // pred_check_branch
          %429 = sbr.rel (%p427) target = $region32
        $region31: #{se_vit_forward.1} parent=11 // pred_region
          _
        $region32: #{se_vit_forward.1} parent=11 // pred_fallthru
          _
      $region12: #{se_vit_forward.1} parent=5 // pred_fallthru
        _
      %p430 = scmp.lt.s32.totalorder %s23, 4
      // Predicated region
      $region33: #{se_vit_forward.1} parent=5 // pred_check
        %p431 = pneg %p430
      $region34: #{se_vit_forward.1} parent=5 // pred_check_branch
        %433 = sbr.rel (%p431) target = $region36
      $region35: #{se_vit_forward.1} parent=5 // pred_region
        // Predicated region
        $region37: #{se_vit_forward.1} parent=35 // pred_check
          %p434 = pneg %p55
        $region38: #{se_vit_forward.1} parent=35 // pred_check_branch
          %436 = sbr.rel (%p434) target = $region40
        $region39: #{se_vit_forward.1} parent=35 // pred_region
          %p437 = scmp.lt.s32.totalorder %s30, 1
          %s438 = scalar_select %p437, %s30, 1
          %s439 = smul.addr %s438, 3
          %s440 = smul.addr %s439, 4
          %s441 = scalar_lea.vmem %s0, %s440
        $region40: #{se_vit_forward.1} parent=35 // pred_fallthru
          _
        // Predicated region
        $region41: #{se_vit_forward.1} parent=35 // pred_check
          %p442 = pneg %p123
        $region42: #{se_vit_forward.1} parent=35 // pred_check_branch
          %444 = sbr.rel (%p442) target = $region44
        $region43: #{se_vit_forward.1} parent=35 // pred_region
          %p445 = scmp.lt.s32.totalorder %s31, 1
          %s446 = scalar_select %p445, %s31, 1
          %s447 = smul.addr %s446, 4
          %s448 = smul.addr %s447, 4
          %s449 = scalar_lea.vmem %s3, %s448
        $region44: #{se_vit_forward.1} parent=35 // pred_fallthru
          _
        // Predicated region
        $region45: #{se_vit_forward.1} parent=35 // pred_check
          %p450 = pneg %p149
        $region46: #{se_vit_forward.1} parent=35 // pred_check_branch
          %452 = sbr.rel (%p450) target = $region48
        $region47: #{se_vit_forward.1} parent=35 // pred_region
          %p453 = scmp.lt.s32.totalorder %s31, 1
          %s454 = scalar_select %p453, %s31, 1
          %s455 = smul.addr %s454, 4
          %s456 = smul.addr %s455, 4
          %s457 = scalar_lea.vmem %s4, %s456
        $region48: #{se_vit_forward.1} parent=35 // pred_fallthru
          _
        // Predicated region
        $region49: #{se_vit_forward.1} parent=35 // pred_check
          %p458 = pneg %p175
        $region50: #{se_vit_forward.1} parent=35 // pred_check_branch
          %460 = sbr.rel (%p458) target = $region52
        $region51: #{se_vit_forward.1} parent=35 // pred_region
          %p461 = scmp.lt.s32.totalorder %s31, 1
          %s462 = scalar_select %p461, %s31, 1
          %s463 = scalar_lea.vmem %s5, %s462
        $region52: #{se_vit_forward.1} parent=35 // pred_fallthru
          _
        // Predicated region
        $region53: #{se_vit_forward.1} parent=35 // pred_check
          %p464 = pneg %p201
        $region54: #{se_vit_forward.1} parent=35 // pred_check_branch
          %466 = sbr.rel (%p464) target = $region56
        $region55: #{se_vit_forward.1} parent=35 // pred_region
          %p467 = scmp.lt.s32.totalorder %s31, 1
          %s468 = scalar_select %p467, %s31, 1
          %s469 = smul.addr %s468, 4
          %s470 = smul.addr %s469, 4
          %s471 = scalar_lea.vmem %s6, %s470
        $region56: #{se_vit_forward.1} parent=35 // pred_fallthru
          _
        // Predicated region
        $region57: #{se_vit_forward.1} parent=35 // pred_check
          %p472 = pneg %p227
        $region58: #{se_vit_forward.1} parent=35 // pred_check_branch
          %474 = sbr.rel (%p472) target = $region60
        $region59: #{se_vit_forward.1} parent=35 // pred_region
          %p475 = scmp.lt.s32.totalorder %s31, 1
          %s476 = scalar_select %p475, %s31, 1
          %s477 = smul.addr %s476, 4
          %s478 = smul.addr %s477, 4
          %s479 = scalar_lea.vmem %s7, %s478
        $region60: #{se_vit_forward.1} parent=35 // pred_fallthru
          _
        // Predicated region
        $region61: #{se_vit_forward.1} parent=35 // pred_check
          %p480 = pneg %p253
        $region62: #{se_vit_forward.1} parent=35 // pred_check_branch
          %482 = sbr.rel (%p480) target = $region64
        $region63: #{se_vit_forward.1} parent=35 // pred_region
          %p483 = scmp.lt.s32.totalorder %s31, 1
          %s484 = scalar_select %p483, %s31, 1
          %s485 = scalar_lea.vmem %s8, %s484
        $region64: #{se_vit_forward.1} parent=35 // pred_fallthru
          _
        // Predicated region
        $region65: #{se_vit_forward.1} parent=35 // pred_check
          %p486 = pneg %p279
        $region66: #{se_vit_forward.1} parent=35 // pred_check_branch
          %488 = sbr.rel (%p486) target = $region68
        $region67: #{se_vit_forward.1} parent=35 // pred_region
          %p489 = scmp.lt.s32.totalorder %s31, 1
          %s490 = scalar_select %p489, %s31, 1
          %s491 = smul.addr %s490, 16
          %s492 = smul.addr %s491, 4
          %s493 = scalar_lea.vmem %s9, %s492
        $region68: #{se_vit_forward.1} parent=35 // pred_fallthru
          _
        // Predicated region
        $region69: #{se_vit_forward.1} parent=35 // pred_check
          %p494 = pneg %p305
        $region70: #{se_vit_forward.1} parent=35 // pred_check_branch
          %496 = sbr.rel (%p494) target = $region72
        $region71: #{se_vit_forward.1} parent=35 // pred_region
          %p497 = scmp.lt.s32.totalorder %s31, 1
          %s498 = scalar_select %p497, %s31, 1
          %s499 = smul.addr %s498, 2
          %s500 = smul.addr %s499, 8
          %s501 = scalar_lea.vmem %s10, %s500
        $region72: #{se_vit_forward.1} parent=35 // pred_fallthru
          _
      $region36: #{se_vit_forward.1} parent=5 // pred_fallthru
        _
      %p502 = scmp.le.s32.totalorder 1, %s23
      %p503 = scmp.lt.s32.totalorder %s23, 5
      %p504 = pnand %p502, %p503
      %p505 = pneg %p504
      // Predicated region
      $region73: #{se_vit_forward.1} parent=5 // pred_check
        _
      $region74: #{se_vit_forward.1} parent=5 // pred_check_branch
        %507 = sbr.rel (%p504) target = $region76
      $region75: #{se_vit_forward.1} parent=5 // pred_region
        %s508 = ssub.s32 %s23, 1
        %p509 = scmp.lt.s32.totalorder %s32, 1
        %s510 = scalar_select %p509, %s32, 1
        %s511 = smul.addr %s510, 3
        %s512 = smul.addr %s511, 4
        %s513 = scalar_lea.vmem %s0, %s512
        %p514 = pneg %p61
        %p515 = pneg %p58
        %p516 = pneg %p82
        %p517 = pneg %p79
        %p518 = pneg %p103
        %p519 = pneg %p100
        %p520 = scmp.lt.s32.totalorder %s33, 1
        %s521 = scalar_select %p520, %s33, 1
        %s522 = smul.addr %s521, 4
        %s523 = smul.addr %s522, 4
        %s524 = scalar_lea.vmem %s3, %s523
        %p525 = pneg %p129
        %p526 = pneg %p126
        %p527 = scmp.lt.s32.totalorder %s33, 1
        %s528 = scalar_select %p527, %s33, 1
        %s529 = smul.addr %s528, 4
        %s530 = smul.addr %s529, 4
        %s531 = scalar_lea.vmem %s4, %s530
        %p532 = pneg %p155
        %p533 = pneg %p152
        %p534 = scmp.lt.s32.totalorder %s33, 1
        %s535 = scalar_select %p534, %s33, 1
        %s536 = scalar_lea.vmem %s5, %s535
        %p537 = pneg %p181
        %p538 = pneg %p178
        %p539 = scmp.lt.s32.totalorder %s33, 1
        %s540 = scalar_select %p539, %s33, 1
        %s541 = smul.addr %s540, 4
        %s542 = smul.addr %s541, 4
        %s543 = scalar_lea.vmem %s6, %s542
        %p544 = pneg %p207
        %p545 = pneg %p204
        %p546 = scmp.lt.s32.totalorder %s33, 1
        %s547 = scalar_select %p546, %s33, 1
        %s548 = smul.addr %s547, 4
        %s549 = smul.addr %s548, 4
        %s550 = scalar_lea.vmem %s7, %s549
        %p551 = pneg %p233
        %p552 = pneg %p230
        %p553 = scmp.lt.s32.totalorder %s33, 1
        %s554 = scalar_select %p553, %s33, 1
        %s555 = scalar_lea.vmem %s8, %s554
        %p556 = pneg %p259
        %p557 = pneg %p256
        %p558 = scmp.lt.s32.totalorder %s33, 1
        %s559 = scalar_select %p558, %s33, 1
        %s560 = smul.addr %s559, 16
        %s561 = smul.addr %s560, 4
        %s562 = scalar_lea.vmem %s9, %s561
        %p563 = pneg %p285
        %p564 = pneg %p282
        %p565 = scmp.lt.s32.totalorder %s33, 1
        %s566 = scalar_select %p565, %s33, 1
        %s567 = smul.addr %s566, 2
        %s568 = smul.addr %s567, 8
        %s569 = scalar_lea.vmem %s10, %s568
        %p570 = pneg %p311
        %p571 = pneg %p308
        %p572 = pneg %p332
        %p573 = pneg %p329
        %p574 = pneg %p353
        %p575 = pneg %p350
        %p576 = pneg %p374
        %p577 = pneg %p371
        %p578 = pneg %p400
        %p579 = pneg %p397
        %s580 = sand.u32 %s387, 1
        %s581 = scalar_lea.sflag [#allocation4], %s580
        %s582 = sand.u32 %s387, 1
        %s583 = scalar_lea.vmem [#allocation3], %s582
        %p584 = scmp.lt.s32.totalorder %s32, 1
        %s585 = scalar_select %p584, %s32, 1
        %s586 = smul.addr %s585, 3
        %s587 = smul.addr %s586, 4
        %s588 = scalar_lea.vmem %s0, %s587
        %p589 = scmp.lt.s32.totalorder %s33, 1
        %s590 = scalar_select %p589, %s33, 1
        %s591 = smul.addr %s590, 4
        %s592 = smul.addr %s591, 4
        %s593 = scalar_lea.vmem %s3, %s592
        %p594 = scmp.lt.s32.totalorder %s33, 1
        %s595 = scalar_select %p594, %s33, 1
        %s596 = smul.addr %s595, 4
        %s597 = smul.addr %s596, 4
        %s598 = scalar_lea.vmem %s4, %s597
        %p599 = scmp.lt.s32.totalorder %s33, 1
        %s600 = scalar_select %p599, %s33, 1
        %s601 = scalar_lea.vmem %s5, %s600
        %p602 = scmp.lt.s32.totalorder %s33, 1
        %s603 = scalar_select %p602, %s33, 1
        %s604 = smul.addr %s603, 4
        %s605 = smul.addr %s604, 4
        %s606 = scalar_lea.vmem %s6, %s605
        %p607 = scmp.lt.s32.totalorder %s33, 1
        %s608 = scalar_select %p607, %s33, 1
        %s609 = smul.addr %s608, 4
        %s610 = smul.addr %s609, 4
        %s611 = scalar_lea.vmem %s7, %s610
        %p612 = scmp.lt.s32.totalorder %s33, 1
        %s613 = scalar_select %p612, %s33, 1
        %s614 = scalar_lea.vmem %s8, %s613
        %p615 = scmp.lt.s32.totalorder %s33, 1
        %s616 = scalar_select %p615, %s33, 1
        %s617 = smul.addr %s616, 16
        %s618 = smul.addr %s617, 4
        %s619 = scalar_lea.vmem %s9, %s618
        %p620 = scmp.lt.s32.totalorder %s33, 1
        %s621 = scalar_select %p620, %s33, 1
        %s622 = smul.addr %s621, 2
        %s623 = smul.addr %s622, 8
        %s624 = scalar_lea.vmem %s10, %s623
        %p626 = scmp.eq.s32.totalorder %s33, 0
        // Predicated region
        $region77: #{se_vit_forward.1} parent=75 // pred_check
          %p627 = pneg %p626
        $region78: #{se_vit_forward.1} parent=75 // pred_check_branch
          %629 = sbr.rel (%p627) target = $region80
        $region79: #{se_vit_forward.1} parent=75 // pred_region
          %v630 = vld [vmem:[%s588] sm:$0xf]
          %v631 = vld [vmem:[%s588 + $0x4] sm:$0xf]
          %v632 = vld [vmem:[%s588 + $0x8] sm:$0x1]
          %v633 = vld [vmem:[%s1] sm:$0xf]
          %v634 = vld [vmem:[%s1 + $0x4] sm:$0xf]
          %v635 = vld [vmem:[%s1 + $0x8] sm:$0xf]
          %v636 = vld [vmem:[%s1 + $0xc] sm:$0xf]
          %v637 = vld [vmem:[%s1 + $0x10] sm:$0xf]
          %v638 = vld [vmem:[%s1 + $0x14] sm:$0xf]
          %v639 = vld [vmem:[%s1 + $0x18] sm:$0xf]
          %v640 = vld [vmem:[%s1 + $0x1c] sm:$0xf]
          %v641 = vld [vmem:[%s2] sm:$0xff]
          %v642 = vld [vmem:[%s2 + $0x8] sm:$0xff]
          %v643 = vld [vmem:[%s2 + $0x10] sm:$0x1]
          %v647 = vunpack.c.l.b16 %v630
          %v648 = vunpack.c.l.b16 %v631
          %v649 = vunpack.c.l.b16 %v632
          %v650 = vpack.c.b16 %v648, %v647
          %v651 = vpack.c.b16 %v649, %v649
          %v660 = vunpack.c.l.b16 %v633
          %v661 = vunpack.c.l.b16 %v634
          %v662 = vunpack.c.l.b16 %v635
          %v663 = vunpack.c.l.b16 %v636
          %v664 = vunpack.c.l.b16 %v637
          %v665 = vunpack.c.l.b16 %v638
          %v666 = vunpack.c.l.b16 %v639
          %v667 = vunpack.c.l.b16 %v640
          %v668 = vpack.c.b16 %v661, %v660
          %v669 = vpack.c.b16 %v663, %v662
          %v670 = vpack.c.b16 %v665, %v664
          %v671 = vpack.c.b16 %v667, %v666
          %vm676 = vcmask 523264
          %v678 = vsel %vm676, %v650, 0
          %v681 = vsel %vm676, %v651, 0
          %683 = vmatprep.subr.bf16.mxu0 0
          %684 = vmatpush1.bf16.msra.mxu0 0
          %685 = vmatprep.subr.bf16.mxu0 0
          %686 = vmatpush1.bf16.msra.mxu0 0
          %687 = vmatprep.subr.bf16.mxu0 0
          %688 = vmatpush1.bf16.msra.mxu0 0
          %689 = vmatprep.subr.bf16.mxu0 0
          %690 = vmatpush1.bf16.msra.mxu0 0
          %691 = vmatprep.subr.bf16.mxu0 0
          %692 = vmatpush1.bf16.msra.mxu0 %v671
          %693 = vmatprep.subr.bf16.mxu0 0
          %694 = vmatpush1.bf16.msra.mxu0 %v670
          %695 = vmatprep.subr.bf16.mxu0 0
          %696 = vmatpush1.bf16.msra.mxu0 %v669
          %697 = vmatprep.subr.bf16.mxu0 0
          %698 = vmatpush1.bf16.msra.mxu0 %v668
          %699 = vmatprep.subr.bf16.mxu0 0
          %700 = vmatpush2.bf16.msra.mxu0 0
          %701 = vmatprep.subr.bf16.mxu0 0
          %702 = vmatpush2.bf16.msra.mxu0 0
          %703 = vmatprep.subr.bf16.mxu0 0
          %704 = vmatpush2.bf16.msra.mxu0 0
          %705 = vmatprep.subr.bf16.mxu0 0
          %706 = vmatpush2.bf16.msra.mxu0 0
          %707 = vmatprep.subr.bf16.mxu0 0
          %708 = vmatpush2.bf16.msra.mxu0 0
          %709 = vmatprep.subr.bf16.mxu0 0
          %710 = vmatpush2.bf16.msra.mxu0 0
          %711 = vmatprep.subr.bf16.mxu0 0
          %712 = vmatpush2.bf16.msra.mxu0 0
          %713 = vmatprep.subr.bf16.mxu0 0
          %714 = vmatpush2.bf16.msra.mxu0 0
          %715 = vmatprep.mubr.bf16.mxu0 0
          %716 = vmatmul.mubr.bf16.gmra.mxu0 %v678
          %v717 = vpop.f32.mrf.mxu0
          %v718 = vadd.f32 %v641, %v717
          %v719 = vpop.f32.mrf.mxu0
          %v720 = vpop.f32.mrf.mxu0
          %v721 = vadd.f32 %v642, %v720
          %v722 = vpop.f32.mrf.mxu0
          %723 = vmatprep.mubr.bf16.mxu0 0
          %724 = vmatmul.mubr.bf16.gmra.mxu0 %v681
          %v725 = vpop.f32.mrf.mxu0
          %v726 = vadd.f32 %v643, %v725
          %v727 = vpop.f32.mrf.mxu0
          %v728 = vpop.f32.mrf.mxu0
          %v729 = vpop.f32.mrf.mxu0
          %730 = vdwg.mxu0
          %vm731 = vcmask 261120
          %732 = vst.msk [vmem:[#allocation2] sm:$0xff] %vm731, %v718
          %733 = vst.msk [vmem:[#allocation2 + $0x8] sm:$0xff] %vm731, %v721
          %vm734 = vcmask 253952
          %735 = vst.msk [vmem:[#allocation2 + $0x10] sm:$0x1] %vm734, %v726
        $region80: #{se_vit_forward.1} parent=75 // pred_fallthru
          _
        %v736 = vld [vmem:[#allocation2] sm:$0xff]
        %v737 = vld [vmem:[#allocation2 + $0x8] sm:$0xff]
        %v738 = vld [vmem:[#allocation2 + $0x10] sm:$0x1]
        %v739 = vld [vmem:[%s624] sm:$0xff]
        %v740 = vld [vmem:[%s624 + $0x8] sm:$0x1]
        %v741 = vlaneseq
        %v742 = vshrl.u32 %v741, 7
        %v743 = vadd.s32 %v742, 8
        %v744 = vadd.s32 %v742, 16
        %v745 = vpack.c.bf16 %v737, %v736
        %v746 = vpack.c.bf16 %v738, %v738
        %v747 = vld [vmem:[%s593] sm:$0xf]
        %v748 = vld [vmem:[%s593 + $0x4] sm:$0xf]
        %v749 = vld [vmem:[%s593 + $0x8] sm:$0xf]
        %v750 = vld [vmem:[%s593 + $0xc] sm:$0xf]
        %v751 = vlaneseq
        %v752 = vshrl.u32 %v751, 7
        %v753 = vsub.s32 6, %v752
        %v754 = vrot.slane %v739, %v753
        %v759 = vunpack.c.l.b16 %v747
        %v760 = vunpack.c.l.b16 %v748
        %v761 = vunpack.c.l.b16 %v749
        %v762 = vunpack.c.l.b16 %v750
        %v763 = vpack.c.b16 %v760, %v759
        %v764 = vpack.c.b16 %v762, %v761
        %vm767 = vcmask 261120
        %v769 = vsel %vm767, %v745, 0
        %v772 = vsel %vm767, %v746, 0
        %774 = vmatprep.subr.bf16.mxu0 0
        %775 = vmatpush1.bf16.msra.mxu0 0
        %776 = vmatprep.subr.bf16.mxu0 0
        %777 = vmatpush1.bf16.msra.mxu0 0
        %778 = vmatprep.subr.bf16.mxu0 0
        %779 = vmatpush1.bf16.msra.mxu0 0
        %780 = vmatprep.subr.bf16.mxu0 0
        %781 = vmatpush1.bf16.msra.mxu0 0
        %782 = vmatprep.subr.bf16.mxu0 0
        %783 = vmatpush1.bf16.msra.mxu0 0
        %784 = vmatprep.subr.bf16.mxu0 0
        %785 = vmatpush1.bf16.msra.mxu0 0
        %786 = vmatprep.subr.bf16.mxu0 0
        %787 = vmatpush1.bf16.msra.mxu0 %v764
        %788 = vmatprep.subr.bf16.mxu0 0
        %789 = vmatpush1.bf16.msra.mxu0 %v763
        %790 = vmatprep.subr.bf16.mxu0 0
        %791 = vmatpush2.bf16.msra.mxu0 0
        %792 = vmatprep.subr.bf16.mxu0 0
        %793 = vmatpush2.bf16.msra.mxu0 0
        %794 = vmatprep.subr.bf16.mxu0 0
        %795 = vmatpush2.bf16.msra.mxu0 0
        %796 = vmatprep.subr.bf16.mxu0 0
        %797 = vmatpush2.bf16.msra.mxu0 0
        %798 = vmatprep.subr.bf16.mxu0 0
        %799 = vmatpush2.bf16.msra.mxu0 0
        %800 = vmatprep.subr.bf16.mxu0 0
        %801 = vmatpush2.bf16.msra.mxu0 0
        %802 = vmatprep.subr.bf16.mxu0 0
        %803 = vmatpush2.bf16.msra.mxu0 0
        %804 = vmatprep.subr.bf16.mxu0 0
        %805 = vmatpush2.bf16.msra.mxu0 0
        %806 = vmatprep.mubr.bf16.mxu0 0
        %807 = vmatmul.mubr.bf16.gmra.mxu0 %v769
        %v808 = vpop.f32.mrf.mxu0
        %v809 = vadd.f32 %v754, %v808
        %v810 = vpop.f32.mrf.mxu0
        %v811 = vpop.f32.mrf.mxu0
        %v812 = vadd.f32 %v754, %v811
        %v813 = vpop.f32.mrf.mxu0
        %814 = vmatprep.mubr.bf16.mxu0 0
        %815 = vmatmul.mubr.bf16.gmra.mxu0 %v772
        %v816 = vpop.f32.mrf.mxu0
        %v817 = vadd.f32 %v754, %v816
        %v818 = vpop.f32.mrf.mxu0
        %v819 = vpop.f32.mrf.mxu0
        %v820 = vpop.f32.mrf.mxu0
        %821 = vdwg.mxu0
        %v822 = vmax.f32 %v809, 0.0
        %v823 = vmax.f32 %v812, 0.0
        %v824 = vmax.f32 %v817, 0.0
        %v825 = vlaneseq
        %v826 = vshrl.u32 %v825, 7
        %v827 = vsub.s32 7, %v826
        %v828 = vrot.slane %v739, %v827
        %v829 = vmul.f32 %v822, %v828
        %v830 = vmul.f32 %v823, %v828
        %v831 = vmul.f32 %v824, %v828
        %vm832 = vcmask 15360
        %v833 = vsel %vm832, %v829, 0.0
        %834 = vadd.xlane.f32.xlu0 %v833
        %v835 = vpop.xlane.xlu0 %834
        %v836 = vsel %vm832, %v830, 0.0
        %837 = vadd.xlane.f32.xlu0 %v836
        %v838 = vpop.xlane.xlu0 %837
        %vm839 = vcmask 8192
        %v840 = vsel %vm839, %v831, 0.0
        %841 = vadd.xlane.f32.xlu0 %v840
        %v842 = vpop.xlane.xlu0 %841
        %v843 = vlaneseq
        %v844 = vshrl.u32 %v843, 7
        %v845 = vsub.s32 0, %v844
        %v846 = vrot.slane %v740, %v845
        %v847 = vadd.f32 %v835, %v846
        %v848 = vadd.f32 %v838, %v846
        %v849 = vadd.f32 %v842, %v846
        %v850 = vxor.u32 %v847, 2147483648
        %v851 = vxor.u32 %v848, 2147483648
        %v852 = vxor.u32 %v849, 2147483648
        %v853 = vmul.f32 %v850, 1.442695
        %v854 = vpow.pop %v853
        %v855 = vmul.f32 %v851, 1.442695
        %v856 = vpow.pop %v855
        %v857 = vmul.f32 %v852, 1.442695
        %v858 = vpow.pop %v857
        %v859 = vadd.f32 %v854, 1.0
        %v860 = vadd.f32 %v856, 1.0
        %v861 = vadd.f32 %v858, 1.0
        %v862 = vrcp.pop %v859
        %v863 = vmul.f32 1.0, %v862
        %v864 = vrcp.pop %v860
        %v865 = vmul.f32 1.0, %v864
        %v866 = vrcp.pop %v861
        %v867 = vmul.f32 1.0, %v866
        %vm868 = vcmp.gt.s32.totalorder %v742, 0
        %vm869 = vcmp.gt.s32.totalorder %v743, 0
        %vm870 = vcmp.gt.s32.totalorder %v744, 0
        %v871 = vsel %vm868, %v863, 1.0
        %v872 = vsel %vm869, %v865, 1.0
        %v873 = vsel %vm870, %v867, 1.0
        %875 = vset.pattern.permute.xlu0 0
        %876 = vperm.xlu0 %875, %v871
        %v877 = vpop.permute.xlu0 %876
        %880 = vset.pattern.permute.xlu0 0
        %881 = vperm.xlu0 %880, %v872
        %v882 = vpop.permute.xlu0 %881
        %885 = vset.pattern.permute.xlu0 0
        %886 = vperm.xlu0 %885, %v873
        %v887 = vpop.permute.xlu0 %886
        %v889 = vmul.f32 %v736, %v877
        %v890 = vmul.f32 %v737, %v882
        %v891 = vmul.f32 %v738, %v887
        %v892 = vsel %vm767, %v889, 0.0
        %893 = vadd.xlane.f32.xlu0 %v892
        %v894 = vpop.xlane.xlu0 %893
        %v895 = vsel %vm767, %v890, 0.0
        %896 = vadd.xlane.f32.xlu0 %v895
        %v897 = vpop.xlane.xlu0 %896
        %vm898 = vcmask 253952
        %v899 = vsel %vm898, %v891, 0.0
        %900 = vadd.xlane.f32.xlu0 %v899
        %v901 = vpop.xlane.xlu0 %900
        %v902 = vrcp.pop 32.0
        %v903 = vmul.f32 %v894, %v902
        %v904 = vmul.f32 %v897, %v902
        %v905 = vmul.f32 %v901, %v902
        %v906 = vsub.f32 %v889, %v903
        %v907 = vsub.f32 %v890, %v904
        %v908 = vsub.f32 %v891, %v905
        %v909 = vmul.f32 %v906, %v906
        %v910 = vmul.f32 %v907, %v907
        %v911 = vmul.f32 %v908, %v908
        %v912 = vsel %vm767, %v909, 0.0
        %913 = vadd.xlane.f32.xlu0 %v912
        %v914 = vpop.xlane.xlu0 %913
        %v915 = vsel %vm767, %v910, 0.0
        %916 = vadd.xlane.f32.xlu0 %v915
        %v917 = vpop.xlane.xlu0 %916
        %v918 = vsel %vm898, %v911, 0.0
        %919 = vadd.xlane.f32.xlu0 %v918
        %v920 = vpop.xlane.xlu0 %919
        %v921 = vmul.f32 %v914, %v902
        %v922 = vmul.f32 %v917, %v902
        %v923 = vmul.f32 %v920, %v902
        %v924 = vadd.f32 %v921, 1e-05
        %v925 = vadd.f32 %v922, 1e-05
        %v926 = vadd.f32 %v923, 1e-05
        %v927 = vrsqrt.pop %v924
        %v928 = vrsqrt.pop %v925
        %v929 = vrsqrt.pop %v926
        %v930 = vmul.f32 %v906, %v927
        %v931 = vmul.f32 %v907, %v928
        %v932 = vmul.f32 %v908, %v929
        %v933 = vlaneseq
        %v934 = vshrl.u32 %v933, 7
        %v935 = vsub.s32 0, %v934
        %v936 = vrot.slane %v739, %v935
        %v937 = vmul.f32 %v930, %v936
        %v938 = vmul.f32 %v931, %v936
        %v939 = vmul.f32 %v932, %v936
        %v940 = vlaneseq
        %v941 = vshrl.u32 %v940, 7
        %v942 = vsub.s32 1, %v941
        %v943 = vrot.slane %v739, %v942
        %v944 = vadd.f32 %v937, %v943
        %v945 = vadd.f32 %v938, %v943
        %v946 = vadd.f32 %v939, %v943
        %v947 = vpack.c.bf16 %v945, %v944
        %v948 = vpack.c.bf16 %v946, %v946
        %v949 = vld [vmem:[%s598] sm:$0xf]
        %v950 = vld [vmem:[%s598 + $0x4] sm:$0xf]
        %v951 = vld [vmem:[%s598 + $0x8] sm:$0xf]
        %v952 = vld [vmem:[%s598 + $0xc] sm:$0xf]
        %v953 = vld [vmem:[%s601] sm:$0x1]
        %v955 = vlaneseq
        %v956 = vshrl.u32 %v955, 7
        %v957 = vsub.s32 0, %v956
        %v958 = vrot.slane %v953, %v957
        %v964 = vunpack.c.l.b16 %v949
        %v965 = vunpack.c.l.b16 %v950
        %v966 = vunpack.c.l.b16 %v951
        %v967 = vunpack.c.l.b16 %v952
        %v968 = vpack.c.b16 %v965, %v964
        %v969 = vpack.c.b16 %v967, %v966
        %v973 = vsel %vm767, %v947, 0
        %v976 = vsel %vm767, %v948, 0
        %978 = vmatprep.subr.bf16.mxu0 0
        %979 = vmatpush1.bf16.msra.mxu0 0
        %980 = vmatprep.subr.bf16.mxu0 0
        %981 = vmatpush1.bf16.msra.mxu0 0
        %982 = vmatprep.subr.bf16.mxu0 0
        %983 = vmatpush1.bf16.msra.mxu0 0
        %984 = vmatprep.subr.bf16.mxu0 0
        %985 = vmatpush1.bf16.msra.mxu0 0
        %986 = vmatprep.subr.bf16.mxu0 0
        %987 = vmatpush1.bf16.msra.mxu0 0
        %988 = vmatprep.subr.bf16.mxu0 0
        %989 = vmatpush1.bf16.msra.mxu0 0
        %990 = vmatprep.subr.bf16.mxu0 0
        %991 = vmatpush1.bf16.msra.mxu0 %v969
        %992 = vmatprep.subr.bf16.mxu0 0
        %993 = vmatpush1.bf16.msra.mxu0 %v968
        %994 = vmatprep.subr.bf16.mxu0 0
        %995 = vmatpush2.bf16.msra.mxu0 0
        %996 = vmatprep.subr.bf16.mxu0 0
        %997 = vmatpush2.bf16.msra.mxu0 0
        %998 = vmatprep.subr.bf16.mxu0 0
        %999 = vmatpush2.bf16.msra.mxu0 0
        %1000 = vmatprep.subr.bf16.mxu0 0
        %1001 = vmatpush2.bf16.msra.mxu0 0
        %1002 = vmatprep.subr.bf16.mxu0 0
        %1003 = vmatpush2.bf16.msra.mxu0 0
        %1004 = vmatprep.subr.bf16.mxu0 0
        %1005 = vmatpush2.bf16.msra.mxu0 0
        %1006 = vmatprep.subr.bf16.mxu0 0
        %1007 = vmatpush2.bf16.msra.mxu0 0
        %1008 = vmatprep.subr.bf16.mxu0 0
        %1009 = vmatpush2.bf16.msra.mxu0 0
        %1010 = vmatprep.mubr.bf16.mxu0 0
        %1011 = vmatmul.mubr.bf16.gmra.mxu0 %v973
        %v1012 = vpop.f32.mrf.mxu0
        %v1013 = vadd.f32 %v958, %v1012
        %v1014 = vpop.f32.mrf.mxu0
        %v1015 = vpop.f32.mrf.mxu0
        %v1016 = vadd.f32 %v958, %v1015
        %v1017 = vpop.f32.mrf.mxu0
        %1018 = vmatprep.mubr.bf16.mxu0 0
        %1019 = vmatmul.mubr.bf16.gmra.mxu0 %v976
        %v1020 = vpop.f32.mrf.mxu0
        %v1021 = vadd.f32 %v958, %v1020
        %v1022 = vpop.f32.mrf.mxu0
        %v1023 = vpop.f32.mrf.mxu0
        %v1024 = vpop.f32.mrf.mxu0
        %1025 = vdwg.mxu0
        %1029 = vrot.lane.b32.xlu0 %v1013, 120
        %v1030 = vpop.permute.xlu0 %1029
        %1031 = vrot.lane.b32.xlu0 %v1016, 120
        %v1032 = vpop.permute.xlu0 %1031
        %1033 = vrot.lane.b32.xlu0 %v1021, 120
        %v1034 = vpop.permute.xlu0 %1033
        %1038 = vrot.lane.b32.xlu0 %v1013, 112
        %v1039 = vpop.permute.xlu0 %1038
        %1040 = vrot.lane.b32.xlu0 %v1016, 112
        %v1041 = vpop.permute.xlu0 %1040
        %1042 = vrot.lane.b32.xlu0 %v1021, 112
        %v1043 = vpop.permute.xlu0 %1042
        %1047 = vrot.lane.b32.xlu0 %v1013, 104
        %v1048 = vpop.permute.xlu0 %1047
        %1049 = vrot.lane.b32.xlu0 %v1016, 104
        %v1050 = vpop.permute.xlu0 %1049
        %1051 = vrot.lane.b32.xlu0 %v1021, 104
        %v1052 = vpop.permute.xlu0 %1051
        %v1056 = vmul.f32 %v1013, 0.35355338
        %v1057 = vmul.f32 %v1016, 0.35355338
        %v1058 = vmul.f32 %v1021, 0.35355338
        %v1059 = vmul.f32 %v1030, 0.35355338
        %v1060 = vmul.f32 %v1032, 0.35355338
        %v1061 = vmul.f32 %v1034, 0.35355338
        %v1062 = vmul.f32 %v1039, 0.35355338
        %v1063 = vmul.f32 %v1041, 0.35355338
        %v1064 = vmul.f32 %v1043, 0.35355338
        %v1065 = vmul.f32 %v1048, 0.35355338
        %v1066 = vmul.f32 %v1050, 0.35355338
        %v1067 = vmul.f32 %v1052, 0.35355338
        %v1068 = vpack.c.bf16 %v1057, %v1056
        %v1069 = vpack.c.bf16 %v1058, %v1058
        %v1070 = vpack.c.bf16 %v1060, %v1059
        %v1071 = vpack.c.bf16 %v1061, %v1061
        %v1072 = vpack.c.bf16 %v1063, %v1062
        %v1073 = vpack.c.bf16 %v1064, %v1064
        %v1074 = vpack.c.bf16 %v1066, %v1065
        %v1075 = vpack.c.bf16 %v1067, %v1067
        %v1076 = vpack.c.bf16 %v1016, %v1013
        %v1077 = vpack.c.bf16 %v1021, %v1021
        %v1078 = vpack.c.bf16 %v1032, %v1030
        %v1079 = vpack.c.bf16 %v1034, %v1034
        %v1080 = vpack.c.bf16 %v1041, %v1039
        %v1081 = vpack.c.bf16 %v1043, %v1043
        %v1082 = vpack.c.bf16 %v1050, %v1048
        %v1083 = vpack.c.bf16 %v1052, %v1052
        %1086 = vrot.lane.b32.xlu0 %v1076, 96
        %v1087 = vpop.permute.xlu0 %1086
        %1088 = vrot.lane.b32.xlu0 %v1077, 96
        %v1089 = vpop.permute.xlu0 %1088
        %vm1090 = vcmask 64512
        %v1092 = vsel %vm1090, %v1068, 0
        %v1095 = vsel %vm1090, %v1069, 0
        %v1098 = vsel %vm1090, %v1087, 0
        %v1101 = vsel %vm1090, %v1089, 0
        %1103 = vmatprep.subr.bf16.mxu0 0
        %1104 = vmatpush1.bf16.xpose.msra.mxu0 0
        %1105 = vmatprep.subr.bf16.mxu0 0
        %1106 = vmatpush1.bf16.xpose.msra.mxu0 0
        %1107 = vmatprep.subr.bf16.mxu0 0
        %1108 = vmatpush1.bf16.xpose.msra.mxu0 0
        %1109 = vmatprep.subr.bf16.mxu0 0
        %1110 = vmatpush1.bf16.xpose.msra.mxu0 0
        %1111 = vmatprep.subr.bf16.mxu0 0
        %1112 = vmatpush1.bf16.xpose.msra.mxu0 0
        %1113 = vmatprep.subr.bf16.mxu0 0
        %1114 = vmatpush1.bf16.xpose.msra.mxu0 0
        %1115 = vmatprep.subr.bf16.mxu0 0
        %1116 = vmatpush1.bf16.xpose.msra.mxu0 %v1101
        %1117 = vmatprep.subr.bf16.mxu0 0
        %1118 = vmatpush1.bf16.xpose.msra.mxu0 %v1098
        %1119 = vmatprep.subr.bf16.mxu0 0
        %1120 = vmatpush2.bf16.xpose.msra.mxu0 0
        %1121 = vmatprep.subr.bf16.mxu0 0
        %1122 = vmatpush2.bf16.xpose.msra.mxu0 0
        %1123 = vmatprep.subr.bf16.mxu0 0
        %1124 = vmatpush2.bf16.xpose.msra.mxu0 0
        %1125 = vmatprep.subr.bf16.mxu0 0
        %1126 = vmatpush2.bf16.xpose.msra.mxu0 0
        %1127 = vmatprep.subr.bf16.mxu0 0
        %1128 = vmatpush2.bf16.xpose.msra.mxu0 0
        %1129 = vmatprep.subr.bf16.mxu0 0
        %1130 = vmatpush2.bf16.xpose.msra.mxu0 0
        %1131 = vmatprep.subr.bf16.mxu0 0
        %1132 = vmatpush2.bf16.xpose.msra.mxu0 0
        %1133 = vmatprep.subr.bf16.mxu0 0
        %1134 = vmatpush2.bf16.xpose.msra.mxu0 0
        %1135 = vmatprep.mubr.bf16.mxu0 0
        %1136 = vmatmul.mubr.bf16.gmra.mxu0 %v1092
        %v1137 = vpop.f32.mrf.mxu0
        %v1138 = vadd.f32 0.0, %v1137
        %v1139 = vpop.f32.mrf.mxu0
        %v1140 = vpop.f32.mrf.mxu0
        %v1141 = vadd.f32 0.0, %v1140
        %v1142 = vpop.f32.mrf.mxu0
        %1143 = vmatprep.mubr.bf16.mxu0 0
        %1144 = vmatmul.mubr.bf16.gmra.mxu0 %v1095
        %v1145 = vpop.f32.mrf.mxu0
        %v1146 = vadd.f32 0.0, %v1145
        %v1147 = vpop.f32.mrf.mxu0
        %v1148 = vpop.f32.mrf.mxu0
        %v1149 = vpop.f32.mrf.mxu0
        %1150 = vdwg.mxu0
        %1153 = vrot.lane.b32.xlu0 %v1078, 96
        %v1154 = vpop.permute.xlu0 %1153
        %1155 = vrot.lane.b32.xlu0 %v1079, 96
        %v1156 = vpop.permute.xlu0 %1155
        %v1158 = vsel %vm1090, %v1070, 0
        %v1161 = vsel %vm1090, %v1071, 0
        %v1164 = vsel %vm1090, %v1154, 0
        %v1167 = vsel %vm1090, %v1156, 0
        %1169 = vmatprep.subr.bf16.mxu0 0
        %1170 = vmatpush1.bf16.xpose.msra.mxu0 0
        %1171 = vmatprep.subr.bf16.mxu0 0
        %1172 = vmatpush1.bf16.xpose.msra.mxu0 0
        %1173 = vmatprep.subr.bf16.mxu0 0
        %1174 = vmatpush1.bf16.xpose.msra.mxu0 0
        %1175 = vmatprep.subr.bf16.mxu0 0
        %1176 = vmatpush1.bf16.xpose.msra.mxu0 0
        %1177 = vmatprep.subr.bf16.mxu0 0
        %1178 = vmatpush1.bf16.xpose.msra.mxu0 0
        %1179 = vmatprep.subr.bf16.mxu0 0
        %1180 = vmatpush1.bf16.xpose.msra.mxu0 0
        %1181 = vmatprep.subr.bf16.mxu0 0
        %1182 = vmatpush1.bf16.xpose.msra.mxu0 %v1167
        %1183 = vmatprep.subr.bf16.mxu0 0
        %1184 = vmatpush1.bf16.xpose.msra.mxu0 %v1164
        %1185 = vmatprep.subr.bf16.mxu0 0
        %1186 = vmatpush2.bf16.xpose.msra.mxu0 0
        %1187 = vmatprep.subr.bf16.mxu0 0
        %1188 = vmatpush2.bf16.xpose.msra.mxu0 0
        %1189 = vmatprep.subr.bf16.mxu0 0
        %1190 = vmatpush2.bf16.xpose.msra.mxu0 0
        %1191 = vmatprep.subr.bf16.mxu0 0
        %1192 = vmatpush2.bf16.xpose.msra.mxu0 0
        %1193 = vmatprep.subr.bf16.mxu0 0
        %1194 = vmatpush2.bf16.xpose.msra.mxu0 0
        %1195 = vmatprep.subr.bf16.mxu0 0
        %1196 = vmatpush2.bf16.xpose.msra.mxu0 0
        %1197 = vmatprep.subr.bf16.mxu0 0
        %1198 = vmatpush2.bf16.xpose.msra.mxu0 0
        %1199 = vmatprep.subr.bf16.mxu0 0
        %1200 = vmatpush2.bf16.xpose.msra.mxu0 0
        %1201 = vmatprep.mubr.bf16.mxu0 0
        %1202 = vmatmul.mubr.bf16.gmra.mxu0 %v1158
        %v1203 = vpop.f32.mrf.mxu0
        %v1204 = vadd.f32 0.0, %v1203
        %v1205 = vpop.f32.mrf.mxu0
        %v1206 = vpop.f32.mrf.mxu0
        %v1207 = vadd.f32 0.0, %v1206
        %v1208 = vpop.f32.mrf.mxu0
        %1209 = vmatprep.mubr.bf16.mxu0 0
        %1210 = vmatmul.mubr.bf16.gmra.mxu0 %v1161
        %v1211 = vpop.f32.mrf.mxu0
        %v1212 = vadd.f32 0.0, %v1211
        %v1213 = vpop.f32.mrf.mxu0
        %v1214 = vpop.f32.mrf.mxu0
        %v1215 = vpop.f32.mrf.mxu0
        %1216 = vdwg.mxu0
        %1219 = vrot.lane.b32.xlu0 %v1080, 96
        %v1220 = vpop.permute.xlu0 %1219
        %1221 = vrot.lane.b32.xlu0 %v1081, 96
        %v1222 = vpop.permute.xlu0 %1221
        %v1224 = vsel %vm1090, %v1072, 0
        %v1227 = vsel %vm1090, %v1073, 0
        %v1230 = vsel %vm1090, %v1220, 0
        %v1233 = vsel %vm1090, %v1222, 0
        %1235 = vmatprep.subr.bf16.mxu0 0
        %1236 = vmatpush1.bf16.xpose.msra.mxu0 0
        %1237 = vmatprep.subr.bf16.mxu0 0
        %1238 = vmatpush1.bf16.xpose.msra.mxu0 0
        %1239 = vmatprep.subr.bf16.mxu0 0
        %1240 = vmatpush1.bf16.xpose.msra.mxu0 0
        %1241 = vmatprep.subr.bf16.mxu0 0
        %1242 = vmatpush1.bf16.xpose.msra.mxu0 0
        %1243 = vmatprep.subr.bf16.mxu0 0
        %1244 = vmatpush1.bf16.xpose.msra.mxu0 0
        %1245 = vmatprep.subr.bf16.mxu0 0
        %1246 = vmatpush1.bf16.xpose.msra.mxu0 0
        %1247 = vmatprep.subr.bf16.mxu0 0
        %1248 = vmatpush1.bf16.xpose.msra.mxu0 %v1233
        %1249 = vmatprep.subr.bf16.mxu0 0
        %1250 = vmatpush1.bf16.xpose.msra.mxu0 %v1230
        %1251 = vmatprep.subr.bf16.mxu0 0
        %1252 = vmatpush2.bf16.xpose.msra.mxu0 0
        %1253 = vmatprep.subr.bf16.mxu0 0
        %1254 = vmatpush2.bf16.xpose.msra.mxu0 0
        %1255 = vmatprep.subr.bf16.mxu0 0
        %1256 = vmatpush2.bf16.xpose.msra.mxu0 0
        %1257 = vmatprep.subr.bf16.mxu0 0
        %1258 = vmatpush2.bf16.xpose.msra.mxu0 0
        %1259 = vmatprep.subr.bf16.mxu0 0
        %1260 = vmatpush2.bf16.xpose.msra.mxu0 0
        %1261 = vmatprep.subr.bf16.mxu0 0
        %1262 = vmatpush2.bf16.xpose.msra.mxu0 0
        %1263 = vmatprep.subr.bf16.mxu0 0
        %1264 = vmatpush2.bf16.xpose.msra.mxu0 0
        %1265 = vmatprep.subr.bf16.mxu0 0
        %1266 = vmatpush2.bf16.xpose.msra.mxu0 0
        %1267 = vmatprep.mubr.bf16.mxu0 0
        %1268 = vmatmul.mubr.bf16.gmra.mxu0 %v1224
        %v1269 = vpop.f32.mrf.mxu0
        %v1270 = vadd.f32 0.0, %v1269
        %v1271 = vpop.f32.mrf.mxu0
        %v1272 = vpop.f32.mrf.mxu0
        %v1273 = vadd.f32 0.0, %v1272
        %v1274 = vpop.f32.mrf.mxu0
        %1275 = vmatprep.mubr.bf16.mxu0 0
        %1276 = vmatmul.mubr.bf16.gmra.mxu0 %v1227
        %v1277 = vpop.f32.mrf.mxu0
        %v1278 = vadd.f32 0.0, %v1277
        %v1279 = vpop.f32.mrf.mxu0
        %v1280 = vpop.f32.mrf.mxu0
        %v1281 = vpop.f32.mrf.mxu0
        %1282 = vdwg.mxu0
        %1285 = vrot.lane.b32.xlu0 %v1082, 96
        %v1286 = vpop.permute.xlu0 %1285
        %1287 = vrot.lane.b32.xlu0 %v1083, 96
        %v1288 = vpop.permute.xlu0 %1287
        %v1290 = vsel %vm1090, %v1074, 0
        %v1293 = vsel %vm1090, %v1075, 0
        %v1296 = vsel %vm1090, %v1286, 0
        %v1299 = vsel %vm1090, %v1288, 0
        %1301 = vmatprep.subr.bf16.mxu0 0
        %1302 = vmatpush1.bf16.xpose.msra.mxu0 0
        %1303 = vmatprep.subr.bf16.mxu0 0
        %1304 = vmatpush1.bf16.xpose.msra.mxu0 0
        %1305 = vmatprep.subr.bf16.mxu0 0
        %1306 = vmatpush1.bf16.xpose.msra.mxu0 0
        %1307 = vmatprep.subr.bf16.mxu0 0
        %1308 = vmatpush1.bf16.xpose.msra.mxu0 0
        %1309 = vmatprep.subr.bf16.mxu0 0
        %1310 = vmatpush1.bf16.xpose.msra.mxu0 0
        %1311 = vmatprep.subr.bf16.mxu0 0
        %1312 = vmatpush1.bf16.xpose.msra.mxu0 0
        %1313 = vmatprep.subr.bf16.mxu0 0
        %1314 = vmatpush1.bf16.xpose.msra.mxu0 %v1299
        %1315 = vmatprep.subr.bf16.mxu0 0
        %1316 = vmatpush1.bf16.xpose.msra.mxu0 %v1296
        %1317 = vmatprep.subr.bf16.mxu0 0
        %1318 = vmatpush2.bf16.xpose.msra.mxu0 0
        %1319 = vmatprep.subr.bf16.mxu0 0
        %1320 = vmatpush2.bf16.xpose.msra.mxu0 0
        %1321 = vmatprep.subr.bf16.mxu0 0
        %1322 = vmatpush2.bf16.xpose.msra.mxu0 0
        %1323 = vmatprep.subr.bf16.mxu0 0
        %1324 = vmatpush2.bf16.xpose.msra.mxu0 0
        %1325 = vmatprep.subr.bf16.mxu0 0
        %1326 = vmatpush2.bf16.xpose.msra.mxu0 0
        %1327 = vmatprep.subr.bf16.mxu0 0
        %1328 = vmatpush2.bf16.xpose.msra.mxu0 0
        %1329 = vmatprep.subr.bf16.mxu0 0
        %1330 = vmatpush2.bf16.xpose.msra.mxu0 0
        %1331 = vmatprep.subr.bf16.mxu0 0
        %1332 = vmatpush2.bf16.xpose.msra.mxu0 0
        %1333 = vmatprep.mubr.bf16.mxu0 0
        %1334 = vmatmul.mubr.bf16.gmra.mxu0 %v1290
        %v1335 = vpop.f32.mrf.mxu0
        %v1336 = vadd.f32 0.0, %v1335
        %v1337 = vpop.f32.mrf.mxu0
        %v1338 = vpop.f32.mrf.mxu0
        %v1339 = vadd.f32 0.0, %v1338
        %v1340 = vpop.f32.mrf.mxu0
        %1341 = vmatprep.mubr.bf16.mxu0 0
        %1342 = vmatmul.mubr.bf16.gmra.mxu0 %v1293
        %v1343 = vpop.f32.mrf.mxu0
        %v1344 = vadd.f32 0.0, %v1343
        %v1345 = vpop.f32.mrf.mxu0
        %v1346 = vpop.f32.mrf.mxu0
        %v1347 = vpop.f32.mrf.mxu0
        %1348 = vdwg.mxu0
        %vm1349 = vcmask 138240
        %v1350 = vsel %vm1349, %v1138, -inf
        %1351 = vmax.xlane.f32.xlu0 %v1350
        %v1352 = vpop.xlane.xlu0 %1351
        %v1353 = vsel %vm1349, %v1141, -inf
        %1354 = vmax.xlane.f32.xlu0 %v1353
        %v1355 = vpop.xlane.xlu0 %1354
        %vm1356 = vcmask 131072
        %v1357 = vsel %vm1356, %v1146, -inf
        %1358 = vmax.xlane.f32.xlu0 %v1357
        %v1359 = vpop.xlane.xlu0 %1358
        %v1360 = vsel %vm1349, %v1204, -inf
        %1361 = vmax.xlane.f32.xlu0 %v1360
        %v1362 = vpop.xlane.xlu0 %1361
        %v1363 = vsel %vm1349, %v1207, -inf
        %1364 = vmax.xlane.f32.xlu0 %v1363
        %v1365 = vpop.xlane.xlu0 %1364
        %v1366 = vsel %vm1356, %v1212, -inf
        %1367 = vmax.xlane.f32.xlu0 %v1366
        %v1368 = vpop.xlane.xlu0 %1367
        %v1369 = vsel %vm1349, %v1270, -inf
        %1370 = vmax.xlane.f32.xlu0 %v1369
        %v1371 = vpop.xlane.xlu0 %1370
        %v1372 = vsel %vm1349, %v1273, -inf
        %1373 = vmax.xlane.f32.xlu0 %v1372
        %v1374 = vpop.xlane.xlu0 %1373
        %v1375 = vsel %vm1356, %v1278, -inf
        %1376 = vmax.xlane.f32.xlu0 %v1375
        %v1377 = vpop.xlane.xlu0 %1376
        %v1378 = vsel %vm1349, %v1336, -inf
        %1379 = vmax.xlane.f32.xlu0 %v1378
        %v1380 = vpop.xlane.xlu0 %1379
        %v1381 = vsel %vm1349, %v1339, -inf
        %1382 = vmax.xlane.f32.xlu0 %v1381
        %v1383 = vpop.xlane.xlu0 %1382
        %v1384 = vsel %vm1356, %v1344, -inf
        %1385 = vmax.xlane.f32.xlu0 %v1384
        %v1386 = vpop.xlane.xlu0 %1385
        %v1387 = vsub.f32 %v1138, %v1352
        %v1388 = vsub.f32 %v1141, %v1355
        %v1389 = vsub.f32 %v1146, %v1359
        %v1390 = vsub.f32 %v1204, %v1362
        %v1391 = vsub.f32 %v1207, %v1365
        %v1392 = vsub.f32 %v1212, %v1368
        %v1393 = vsub.f32 %v1270, %v1371
        %v1394 = vsub.f32 %v1273, %v1374
        %v1395 = vsub.f32 %v1278, %v1377
        %v1396 = vsub.f32 %v1336, %v1380
        %v1397 = vsub.f32 %v1339, %v1383
        %v1398 = vsub.f32 %v1344, %v1386
        %v1399 = vmul.f32 %v1387, 1.442695
        %v1400 = vpow.pop %v1399
        %v1401 = vmul.f32 %v1388, 1.442695
        %v1402 = vpow.pop %v1401
        %v1403 = vmul.f32 %v1389, 1.442695
        %v1404 = vpow.pop %v1403
        %v1405 = vmul.f32 %v1390, 1.442695
        %v1406 = vpow.pop %v1405
        %v1407 = vmul.f32 %v1391, 1.442695
        %v1408 = vpow.pop %v1407
        %v1409 = vmul.f32 %v1392, 1.442695
        %v1410 = vpow.pop %v1409
        %v1411 = vmul.f32 %v1393, 1.442695
        %v1412 = vpow.pop %v1411
        %v1413 = vmul.f32 %v1394, 1.442695
        %v1414 = vpow.pop %v1413
        %v1415 = vmul.f32 %v1395, 1.442695
        %v1416 = vpow.pop %v1415
        %v1417 = vmul.f32 %v1396, 1.442695
        %v1418 = vpow.pop %v1417
        %v1419 = vmul.f32 %v1397, 1.442695
        %v1420 = vpow.pop %v1419
        %v1421 = vmul.f32 %v1398, 1.442695
        %v1422 = vpow.pop %v1421
        %v1423 = vsel %vm1349, %v1400, 0.0
        %1424 = vadd.xlane.f32.xlu0 %v1423
        %v1425 = vpop.xlane.xlu0 %1424
        %v1426 = vsel %vm1349, %v1402, 0.0
        %1427 = vadd.xlane.f32.xlu0 %v1426
        %v1428 = vpop.xlane.xlu0 %1427
        %v1429 = vsel %vm1356, %v1404, 0.0
        %1430 = vadd.xlane.f32.xlu0 %v1429
        %v1431 = vpop.xlane.xlu0 %1430
        %v1432 = vsel %vm1349, %v1406, 0.0
        %1433 = vadd.xlane.f32.xlu0 %v1432
        %v1434 = vpop.xlane.xlu0 %1433
        %v1435 = vsel %vm1349, %v1408, 0.0
        %1436 = vadd.xlane.f32.xlu0 %v1435
        %v1437 = vpop.xlane.xlu0 %1436
        %v1438 = vsel %vm1356, %v1410, 0.0
        %1439 = vadd.xlane.f32.xlu0 %v1438
        %v1440 = vpop.xlane.xlu0 %1439
        %v1441 = vsel %vm1349, %v1412, 0.0
        %1442 = vadd.xlane.f32.xlu0 %v1441
        %v1443 = vpop.xlane.xlu0 %1442
        %v1444 = vsel %vm1349, %v1414, 0.0
        %1445 = vadd.xlane.f32.xlu0 %v1444
        %v1446 = vpop.xlane.xlu0 %1445
        %v1447 = vsel %vm1356, %v1416, 0.0
        %1448 = vadd.xlane.f32.xlu0 %v1447
        %v1449 = vpop.xlane.xlu0 %1448
        %v1450 = vsel %vm1349, %v1418, 0.0
        %1451 = vadd.xlane.f32.xlu0 %v1450
        %v1452 = vpop.xlane.xlu0 %1451
        %v1453 = vsel %vm1349, %v1420, 0.0
        %1454 = vadd.xlane.f32.xlu0 %v1453
        %v1455 = vpop.xlane.xlu0 %1454
        %v1456 = vsel %vm1356, %v1422, 0.0
        %1457 = vadd.xlane.f32.xlu0 %v1456
        %v1458 = vpop.xlane.xlu0 %1457
        %v1459 = vrcp.pop %v1425
        %v1460 = vrcp.pop %v1428
        %v1461 = vrcp.pop %v1431
        %v1462 = vrcp.pop %v1434
        %v1463 = vrcp.pop %v1437
        %v1464 = vrcp.pop %v1440
        %v1465 = vrcp.pop %v1443
        %v1466 = vrcp.pop %v1446
        %v1467 = vrcp.pop %v1449
        %v1468 = vrcp.pop %v1452
        %v1469 = vrcp.pop %v1455
        %v1470 = vrcp.pop %v1458
        %v1471 = vmul.f32 %v1400, %v1459
        %v1472 = vmul.f32 %v1402, %v1460
        %v1473 = vmul.f32 %v1404, %v1461
        %v1474 = vmul.f32 %v1406, %v1462
        %v1475 = vmul.f32 %v1408, %v1463
        %v1476 = vmul.f32 %v1410, %v1464
        %v1477 = vmul.f32 %v1412, %v1465
        %v1478 = vmul.f32 %v1414, %v1466
        %v1479 = vmul.f32 %v1416, %v1467
        %v1480 = vmul.f32 %v1418, %v1468
        %v1481 = vmul.f32 %v1420, %v1469
        %v1482 = vmul.f32 %v1422, %v1470
        %v1483 = vpack.c.bf16 %v1472, %v1471
        %v1484 = vpack.c.bf16 %v1473, %v1473
        %v1485 = vpack.c.bf16 %v1475, %v1474
        %v1486 = vpack.c.bf16 %v1476, %v1476
        %v1487 = vpack.c.bf16 %v1478, %v1477
        %v1488 = vpack.c.bf16 %v1479, %v1479
        %v1489 = vpack.c.bf16 %v1481, %v1480
        %v1490 = vpack.c.bf16 %v1482, %v1482
        %1491 = vrot.lane.b32.xlu0 %v1076, 64
        %v1492 = vpop.permute.xlu0 %1491
        %1493 = vrot.lane.b32.xlu0 %v1077, 64
        %v1494 = vpop.permute.xlu0 %1493
        %v1497 = vsel %vm1349, %v1483, 0
        %v1500 = vsel %vm1349, %v1484, 0
        %vm1502 = vcmask 1040384
        %v1503 = vsel 0, 4294967295, 65535
        %v1504 = vsel %vm1502, %v1503, 0
        %v1506 = vand.u32 %v1494, %v1504
        %1508 = vmatprep.subr.bf16.mxu0 0
        %1509 = vmatpush1.bf16.msra.mxu0 0
        %1510 = vmatprep.subr.bf16.mxu0 0
        %1511 = vmatpush1.bf16.msra.mxu0 0
        %1512 = vmatprep.subr.bf16.mxu0 0
        %1513 = vmatpush1.bf16.msra.mxu0 0
        %1514 = vmatprep.subr.bf16.mxu0 0
        %1515 = vmatpush1.bf16.msra.mxu0 0
        %1516 = vmatprep.subr.bf16.mxu0 0
        %1517 = vmatpush1.bf16.msra.mxu0 0
        %1518 = vmatprep.subr.bf16.mxu0 0
        %1519 = vmatpush1.bf16.msra.mxu0 0
        %1520 = vmatprep.subr.bf16.mxu0 0
        %1521 = vmatpush1.bf16.msra.mxu0 %v1506
        %1522 = vmatprep.subr.bf16.mxu0 0
        %1523 = vmatpush1.bf16.msra.mxu0 %v1492
        %1524 = vmatprep.subr.bf16.mxu0 0
        %1525 = vmatpush2.bf16.msra.mxu0 0
        %1526 = vmatprep.subr.bf16.mxu0 0
        %1527 = vmatpush2.bf16.msra.mxu0 0
        %1528 = vmatprep.subr.bf16.mxu0 0
        %1529 = vmatpush2.bf16.msra.mxu0 0
        %1530 = vmatprep.subr.bf16.mxu0 0
        %1531 = vmatpush2.bf16.msra.mxu0 0
        %1532 = vmatprep.subr.bf16.mxu0 0
        %1533 = vmatpush2.bf16.msra.mxu0 0
        %1534 = vmatprep.subr.bf16.mxu0 0
        %1535 = vmatpush2.bf16.msra.mxu0 0
        %1536 = vmatprep.subr.bf16.mxu0 0
        %1537 = vmatpush2.bf16.msra.mxu0 0
        %1538 = vmatprep.subr.bf16.mxu0 0
        %1539 = vmatpush2.bf16.msra.mxu0 0
        %1540 = vmatprep.mubr.bf16.mxu0 0
        %1541 = vmatmul.mubr.bf16.gmra.mxu0 %v1497
        %v1542 = vpop.f32.mrf.mxu0
        %v1543 = vadd.f32 0.0, %v1542
        %v1544 = vpop.f32.mrf.mxu0
        %v1545 = vpop.f32.mrf.mxu0
        %v1546 = vadd.f32 0.0, %v1545
        %v1547 = vpop.f32.mrf.mxu0
        %1548 = vmatprep.mubr.bf16.mxu0 0
        %1549 = vmatmul.mubr.bf16.gmra.mxu0 %v1500
        %v1550 = vpop.f32.mrf.mxu0
        %v1551 = vadd.f32 0.0, %v1550
        %v1552 = vpop.f32.mrf.mxu0
        %v1553 = vpop.f32.mrf.mxu0
        %v1554 = vpop.f32.mrf.mxu0
        %1555 = vdwg.mxu0
        %1556 = vrot.lane.b32.xlu0 %v1078, 64
        %v1557 = vpop.permute.xlu0 %1556
        %1558 = vrot.lane.b32.xlu0 %v1079, 64
        %v1559 = vpop.permute.xlu0 %1558
        %v1562 = vsel %vm1349, %v1485, 0
        %v1565 = vsel %vm1349, %v1486, 0
        %v1568 = vand.u32 %v1559, %v1504
        %1570 = vmatprep.subr.bf16.mxu0 0
        %1571 = vmatpush1.bf16.msra.mxu0 0
        %1572 = vmatprep.subr.bf16.mxu0 0
        %1573 = vmatpush1.bf16.msra.mxu0 0
        %1574 = vmatprep.subr.bf16.mxu0 0
        %1575 = vmatpush1.bf16.msra.mxu0 0
        %1576 = vmatprep.subr.bf16.mxu0 0
        %1577 = vmatpush1.bf16.msra.mxu0 0
        %1578 = vmatprep.subr.bf16.mxu0 0
        %1579 = vmatpush1.bf16.msra.mxu0 0
        %1580 = vmatprep.subr.bf16.mxu0 0
        %1581 = vmatpush1.bf16.msra.mxu0 0
        %1582 = vmatprep.subr.bf16.mxu0 0
        %1583 = vmatpush1.bf16.msra.mxu0 %v1568
        %1584 = vmatprep.subr.bf16.mxu0 0
        %1585 = vmatpush1.bf16.msra.mxu0 %v1557
        %1586 = vmatprep.subr.bf16.mxu0 0
        %1587 = vmatpush2.bf16.msra.mxu0 0
        %1588 = vmatprep.subr.bf16.mxu0 0
        %1589 = vmatpush2.bf16.msra.mxu0 0
        %1590 = vmatprep.subr.bf16.mxu0 0
        %1591 = vmatpush2.bf16.msra.mxu0 0
        %1592 = vmatprep.subr.bf16.mxu0 0
        %1593 = vmatpush2.bf16.msra.mxu0 0
        %1594 = vmatprep.subr.bf16.mxu0 0
        %1595 = vmatpush2.bf16.msra.mxu0 0
        %1596 = vmatprep.subr.bf16.mxu0 0
        %1597 = vmatpush2.bf16.msra.mxu0 0
        %1598 = vmatprep.subr.bf16.mxu0 0
        %1599 = vmatpush2.bf16.msra.mxu0 0
        %1600 = vmatprep.subr.bf16.mxu0 0
        %1601 = vmatpush2.bf16.msra.mxu0 0
        %1602 = vmatprep.mubr.bf16.mxu0 0
        %1603 = vmatmul.mubr.bf16.gmra.mxu0 %v1562
        %v1604 = vpop.f32.mrf.mxu0
        %v1605 = vadd.f32 0.0, %v1604
        %v1606 = vpop.f32.mrf.mxu0
        %v1607 = vpop.f32.mrf.mxu0
        %v1608 = vadd.f32 0.0, %v1607
        %v1609 = vpop.f32.mrf.mxu0
        %1610 = vmatprep.mubr.bf16.mxu0 0
        %1611 = vmatmul.mubr.bf16.gmra.mxu0 %v1565
        %v1612 = vpop.f32.mrf.mxu0
        %v1613 = vadd.f32 0.0, %v1612
        %v1614 = vpop.f32.mrf.mxu0
        %v1615 = vpop.f32.mrf.mxu0
        %v1616 = vpop.f32.mrf.mxu0
        %1617 = vdwg.mxu0
        %1618 = vrot.lane.b32.xlu0 %v1080, 64
        %v1619 = vpop.permute.xlu0 %1618
        %1620 = vrot.lane.b32.xlu0 %v1081, 64
        %v1621 = vpop.permute.xlu0 %1620
        %v1624 = vsel %vm1349, %v1487, 0
        %v1627 = vsel %vm1349, %v1488, 0
        %v1630 = vand.u32 %v1621, %v1504
        %1632 = vmatprep.subr.bf16.mxu0 0
        %1633 = vmatpush1.bf16.msra.mxu0 0
        %1634 = vmatprep.subr.bf16.mxu0 0
        %1635 = vmatpush1.bf16.msra.mxu0 0
        %1636 = vmatprep.subr.bf16.mxu0 0
        %1637 = vmatpush1.bf16.msra.mxu0 0
        %1638 = vmatprep.subr.bf16.mxu0 0
        %1639 = vmatpush1.bf16.msra.mxu0 0
        %1640 = vmatprep.subr.bf16.mxu0 0
        %1641 = vmatpush1.bf16.msra.mxu0 0
        %1642 = vmatprep.subr.bf16.mxu0 0
        %1643 = vmatpush1.bf16.msra.mxu0 0
        %1644 = vmatprep.subr.bf16.mxu0 0
        %1645 = vmatpush1.bf16.msra.mxu0 %v1630
        %1646 = vmatprep.subr.bf16.mxu0 0
        %1647 = vmatpush1.bf16.msra.mxu0 %v1619
        %1648 = vmatprep.subr.bf16.mxu0 0
        %1649 = vmatpush2.bf16.msra.mxu0 0
        %1650 = vmatprep.subr.bf16.mxu0 0
        %1651 = vmatpush2.bf16.msra.mxu0 0
        %1652 = vmatprep.subr.bf16.mxu0 0
        %1653 = vmatpush2.bf16.msra.mxu0 0
        %1654 = vmatprep.subr.bf16.mxu0 0
        %1655 = vmatpush2.bf16.msra.mxu0 0
        %1656 = vmatprep.subr.bf16.mxu0 0
        %1657 = vmatpush2.bf16.msra.mxu0 0
        %1658 = vmatprep.subr.bf16.mxu0 0
        %1659 = vmatpush2.bf16.msra.mxu0 0
        %1660 = vmatprep.subr.bf16.mxu0 0
        %1661 = vmatpush2.bf16.msra.mxu0 0
        %1662 = vmatprep.subr.bf16.mxu0 0
        %1663 = vmatpush2.bf16.msra.mxu0 0
        %1664 = vmatprep.mubr.bf16.mxu0 0
        %1665 = vmatmul.mubr.bf16.gmra.mxu0 %v1624
        %v1666 = vpop.f32.mrf.mxu0
        %v1667 = vadd.f32 0.0, %v1666
        %v1668 = vpop.f32.mrf.mxu0
        %v1669 = vpop.f32.mrf.mxu0
        %v1670 = vadd.f32 0.0, %v1669
        %v1671 = vpop.f32.mrf.mxu0
        %1672 = vmatprep.mubr.bf16.mxu0 0
        %1673 = vmatmul.mubr.bf16.gmra.mxu0 %v1627
        %v1674 = vpop.f32.mrf.mxu0
        %v1675 = vadd.f32 0.0, %v1674
        %v1676 = vpop.f32.mrf.mxu0
        %v1677 = vpop.f32.mrf.mxu0
        %v1678 = vpop.f32.mrf.mxu0
        %1679 = vdwg.mxu0
        %1680 = vrot.lane.b32.xlu0 %v1082, 64
        %v1681 = vpop.permute.xlu0 %1680
        %1682 = vrot.lane.b32.xlu0 %v1083, 64
        %v1683 = vpop.permute.xlu0 %1682
        %v1686 = vsel %vm1349, %v1489, 0
        %v1689 = vsel %vm1349, %v1490, 0
        %v1692 = vand.u32 %v1683, %v1504
        %1694 = vmatprep.subr.bf16.mxu0 0
        %1695 = vmatpush1.bf16.msra.mxu0 0
        %1696 = vmatprep.subr.bf16.mxu0 0
        %1697 = vmatpush1.bf16.msra.mxu0 0
        %1698 = vmatprep.subr.bf16.mxu0 0
        %1699 = vmatpush1.bf16.msra.mxu0 0
        %1700 = vmatprep.subr.bf16.mxu0 0
        %1701 = vmatpush1.bf16.msra.mxu0 0
        %1702 = vmatprep.subr.bf16.mxu0 0
        %1703 = vmatpush1.bf16.msra.mxu0 0
        %1704 = vmatprep.subr.bf16.mxu0 0
        %1705 = vmatpush1.bf16.msra.mxu0 0
        %1706 = vmatprep.subr.bf16.mxu0 0
        %1707 = vmatpush1.bf16.msra.mxu0 %v1692
        %1708 = vmatprep.subr.bf16.mxu0 0
        %1709 = vmatpush1.bf16.msra.mxu0 %v1681
        %1710 = vmatprep.subr.bf16.mxu0 0
        %1711 = vmatpush2.bf16.msra.mxu0 0
        %1712 = vmatprep.subr.bf16.mxu0 0
        %1713 = vmatpush2.bf16.msra.mxu0 0
        %1714 = vmatprep.subr.bf16.mxu0 0
        %1715 = vmatpush2.bf16.msra.mxu0 0
        %1716 = vmatprep.subr.bf16.mxu0 0
        %1717 = vmatpush2.bf16.msra.mxu0 0
        %1718 = vmatprep.subr.bf16.mxu0 0
        %1719 = vmatpush2.bf16.msra.mxu0 0
        %1720 = vmatprep.subr.bf16.mxu0 0
        %1721 = vmatpush2.bf16.msra.mxu0 0
        %1722 = vmatprep.subr.bf16.mxu0 0
        %1723 = vmatpush2.bf16.msra.mxu0 0
        %1724 = vmatprep.subr.bf16.mxu0 0
        %1725 = vmatpush2.bf16.msra.mxu0 0
        %1726 = vmatprep.mubr.bf16.mxu0 0
        %1727 = vmatmul.mubr.bf16.gmra.mxu0 %v1686
        %v1728 = vpop.f32.mrf.mxu0
        %v1729 = vadd.f32 0.0, %v1728
        %v1730 = vpop.f32.mrf.mxu0
        %v1731 = vpop.f32.mrf.mxu0
        %v1732 = vadd.f32 0.0, %v1731
        %v1733 = vpop.f32.mrf.mxu0
        %1734 = vmatprep.mubr.bf16.mxu0 0
        %1735 = vmatmul.mubr.bf16.gmra.mxu0 %v1689
        %v1736 = vpop.f32.mrf.mxu0
        %v1737 = vadd.f32 0.0, %v1736
        %v1738 = vpop.f32.mrf.mxu0
        %v1739 = vpop.f32.mrf.mxu0
        %v1740 = vpop.f32.mrf.mxu0
        %1741 = vdwg.mxu0
        %1745 = vrot.lane.b32.xlu0 %v1605, 8
        %v1746 = vpop.permute.xlu0 %1745
        %1747 = vrot.lane.b32.xlu0 %v1608, 8
        %v1748 = vpop.permute.xlu0 %1747
        %1749 = vrot.lane.b32.xlu0 %v1613, 8
        %v1750 = vpop.permute.xlu0 %1749
        %1757 = vrot.lane.b32.xlu0 %v1667, 16
        %v1758 = vpop.permute.xlu0 %1757
        %1759 = vrot.lane.b32.xlu0 %v1670, 16
        %v1760 = vpop.permute.xlu0 %1759
        %1761 = vrot.lane.b32.xlu0 %v1675, 16
        %v1762 = vpop.permute.xlu0 %1761
        %1769 = vrot.lane.b32.xlu0 %v1729, 24
        %v1770 = vpop.permute.xlu0 %1769
        %1771 = vrot.lane.b32.xlu0 %v1732, 24
        %v1772 = vpop.permute.xlu0 %1771
        %1773 = vrot.lane.b32.xlu0 %v1737, 24
        %v1774 = vpop.permute.xlu0 %1773
        %v1778 = vsel %vm1090, %v1543, %v1746
        %v1779 = vsel %vm1090, %v1546, %v1748
        %v1780 = vsel %vm1090, %v1551, %v1750
        %vm1781 = vcmask 130048
        %v1782 = vsel %vm1781, %v1778, %v1758
        %v1783 = vsel %vm1781, %v1779, %v1760
        %v1784 = vsel %vm1781, %v1780, %v1762
        %vm1785 = vcmask 195584
        %v1786 = vsel %vm1785, %v1782, %v1770
        %v1787 = vsel %vm1785, %v1783, %v1772
        %v1788 = vsel %vm1785, %v1784, %v1774
        %v1789 = vpack.c.bf16 %v1787, %v1786
        %v1790 = vpack.c.bf16 %v1788, %v1788
        %v1791 = vld [vmem:[%s606] sm:$0xf]
        %v1792 = vld [vmem:[%s606 + $0x4] sm:$0xf]
        %v1793 = vld [vmem:[%s606 + $0x8] sm:$0xf]
        %v1794 = vld [vmem:[%s606 + $0xc] sm:$0xf]
        %v1799 = vunpack.c.l.b16 %v1791
        %v1800 = vunpack.c.l.b16 %v1792
        %v1801 = vunpack.c.l.b16 %v1793
        %v1802 = vunpack.c.l.b16 %v1794
        %v1803 = vpack.c.b16 %v1800, %v1799
        %v1804 = vpack.c.b16 %v1802, %v1801
        %v1808 = vsel %vm767, %v1789, 0
        %v1811 = vsel %vm767, %v1790, 0
        %1813 = vmatprep.subr.bf16.mxu0 0
        %1814 = vmatpush1.bf16.msra.mxu0 0
        %1815 = vmatprep.subr.bf16.mxu0 0
        %1816 = vmatpush1.bf16.msra.mxu0 0
        %1817 = vmatprep.subr.bf16.mxu0 0
        %1818 = vmatpush1.bf16.msra.mxu0 0
        %1819 = vmatprep.subr.bf16.mxu0 0
        %1820 = vmatpush1.bf16.msra.mxu0 0
        %1821 = vmatprep.subr.bf16.mxu0 0
        %1822 = vmatpush1.bf16.msra.mxu0 0
        %1823 = vmatprep.subr.bf16.mxu0 0
        %1824 = vmatpush1.bf16.msra.mxu0 0
        %1825 = vmatprep.subr.bf16.mxu0 0
        %1826 = vmatpush1.bf16.msra.mxu0 %v1804
        %1827 = vmatprep.subr.bf16.mxu0 0
        %1828 = vmatpush1.bf16.msra.mxu0 %v1803
        %1829 = vmatprep.subr.bf16.mxu0 0
        %1830 = vmatpush2.bf16.msra.mxu0 0
        %1831 = vmatprep.subr.bf16.mxu0 0
        %1832 = vmatpush2.bf16.msra.mxu0 0
        %1833 = vmatprep.subr.bf16.mxu0 0
        %1834 = vmatpush2.bf16.msra.mxu0 0
        %1835 = vmatprep.subr.bf16.mxu0 0
        %1836 = vmatpush2.bf16.msra.mxu0 0
        %1837 = vmatprep.subr.bf16.mxu0 0
        %1838 = vmatpush2.bf16.msra.mxu0 0
        %1839 = vmatprep.subr.bf16.mxu0 0
        %1840 = vmatpush2.bf16.msra.mxu0 0
        %1841 = vmatprep.subr.bf16.mxu0 0
        %1842 = vmatpush2.bf16.msra.mxu0 0
        %1843 = vmatprep.subr.bf16.mxu0 0
        %1844 = vmatpush2.bf16.msra.mxu0 0
        %1845 = vmatprep.mubr.bf16.mxu0 0
        %1846 = vmatmul.mubr.bf16.gmra.mxu0 %v1808
        %v1847 = vpop.f32.mrf.mxu0
        %v1848 = vadd.f32 0.0, %v1847
        %v1849 = vpop.f32.mrf.mxu0
        %v1850 = vpop.f32.mrf.mxu0
        %v1851 = vadd.f32 0.0, %v1850
        %v1852 = vpop.f32.mrf.mxu0
        %1853 = vmatprep.mubr.bf16.mxu0 0
        %1854 = vmatmul.mubr.bf16.gmra.mxu0 %v1811
        %v1855 = vpop.f32.mrf.mxu0
        %v1856 = vadd.f32 0.0, %v1855
        %v1857 = vpop.f32.mrf.mxu0
        %v1858 = vpop.f32.mrf.mxu0
        %v1859 = vpop.f32.mrf.mxu0
        %1860 = vdwg.mxu0
        %v1861 = vadd.f32 %v889, %v1848
        %v1862 = vadd.f32 %v890, %v1851
        %v1863 = vadd.f32 %v891, %v1856
        %v1864 = vlaneseq
        %v1865 = vshrl.u32 %v1864, 7
        %v1866 = vsub.s32 4, %v1865
        %v1867 = vrot.slane %v739, %v1866
        %v1868 = vadd.f32 %v1861, %v1867
        %v1869 = vadd.f32 %v1862, %v1867
        %v1870 = vadd.f32 %v1863, %v1867
        %v1871 = vsel %vm767, %v1868, 0.0
        %1872 = vadd.xlane.f32.xlu0 %v1871
        %v1873 = vpop.xlane.xlu0 %1872
        %v1874 = vsel %vm767, %v1869, 0.0
        %1875 = vadd.xlane.f32.xlu0 %v1874
        %v1876 = vpop.xlane.xlu0 %1875
        %v1877 = vsel %vm898, %v1870, 0.0
        %1878 = vadd.xlane.f32.xlu0 %v1877
        %v1879 = vpop.xlane.xlu0 %1878
        %v1880 = vmul.f32 %v1873, %v902
        %v1881 = vmul.f32 %v1876, %v902
        %v1882 = vmul.f32 %v1879, %v902
        %v1883 = vsub.f32 %v1868, %v1880
        %v1884 = vsub.f32 %v1869, %v1881
        %v1885 = vsub.f32 %v1870, %v1882
        %v1886 = vmul.f32 %v1883, %v1883
        %v1887 = vmul.f32 %v1884, %v1884
        %v1888 = vmul.f32 %v1885, %v1885
        %v1889 = vsel %vm767, %v1886, 0.0
        %1890 = vadd.xlane.f32.xlu0 %v1889
        %v1891 = vpop.xlane.xlu0 %1890
        %v1892 = vsel %vm767, %v1887, 0.0
        %1893 = vadd.xlane.f32.xlu0 %v1892
        %v1894 = vpop.xlane.xlu0 %1893
        %v1895 = vsel %vm898, %v1888, 0.0
        %1896 = vadd.xlane.f32.xlu0 %v1895
        %v1897 = vpop.xlane.xlu0 %1896
        %v1898 = vmul.f32 %v1891, %v902
        %v1899 = vmul.f32 %v1894, %v902
        %v1900 = vmul.f32 %v1897, %v902
        %v1901 = vadd.f32 %v1898, 1e-05
        %v1902 = vadd.f32 %v1899, 1e-05
        %v1903 = vadd.f32 %v1900, 1e-05
        %v1904 = vrsqrt.pop %v1901
        %v1905 = vrsqrt.pop %v1902
        %v1906 = vrsqrt.pop %v1903
        %v1907 = vmul.f32 %v1883, %v1904
        %v1908 = vmul.f32 %v1884, %v1905
        %v1909 = vmul.f32 %v1885, %v1906
        %v1910 = vlaneseq
        %v1911 = vshrl.u32 %v1910, 7
        %v1912 = vsub.s32 2, %v1911
        %v1913 = vrot.slane %v739, %v1912
        %v1914 = vmul.f32 %v1907, %v1913
        %v1915 = vmul.f32 %v1908, %v1913
        %v1916 = vmul.f32 %v1909, %v1913
        %v1917 = vlaneseq
        %v1918 = vshrl.u32 %v1917, 7
        %v1919 = vsub.s32 3, %v1918
        %v1920 = vrot.slane %v739, %v1919
        %v1921 = vadd.f32 %v1914, %v1920
        %v1922 = vadd.f32 %v1915, %v1920
        %v1923 = vadd.f32 %v1916, %v1920
        %v1924 = vpack.c.bf16 %v1922, %v1921
        %v1925 = vpack.c.bf16 %v1923, %v1923
        %v1926 = vld [vmem:[%s611] sm:$0xf]
        %v1927 = vld [vmem:[%s611 + $0x4] sm:$0xf]
        %v1928 = vld [vmem:[%s611 + $0x8] sm:$0xf]
        %v1929 = vld [vmem:[%s611 + $0xc] sm:$0xf]
        %v1930 = vld [vmem:[%s614] sm:$0x1]
        %v1932 = vlaneseq
        %v1933 = vshrl.u32 %v1932, 7
        %v1934 = vsub.s32 0, %v1933
        %v1935 = vrot.slane %v1930, %v1934
        %v1941 = vunpack.c.l.b16 %v1926
        %v1942 = vunpack.c.l.b16 %v1927
        %v1943 = vunpack.c.l.b16 %v1928
        %v1944 = vunpack.c.l.b16 %v1929
        %v1945 = vpack.c.b16 %v1942, %v1941
        %v1946 = vpack.c.b16 %v1944, %v1943
        %v1950 = vsel %vm767, %v1924, 0
        %v1953 = vsel %vm767, %v1925, 0
        %1955 = vmatprep.subr.bf16.mxu0 0
        %1956 = vmatpush1.bf16.msra.mxu0 0
        %1957 = vmatprep.subr.bf16.mxu0 0
        %1958 = vmatpush1.bf16.msra.mxu0 0
        %1959 = vmatprep.subr.bf16.mxu0 0
        %1960 = vmatpush1.bf16.msra.mxu0 0
        %1961 = vmatprep.subr.bf16.mxu0 0
        %1962 = vmatpush1.bf16.msra.mxu0 0
        %1963 = vmatprep.subr.bf16.mxu0 0
        %1964 = vmatpush1.bf16.msra.mxu0 0
        %1965 = vmatprep.subr.bf16.mxu0 0
        %1966 = vmatpush1.bf16.msra.mxu0 0
        %1967 = vmatprep.subr.bf16.mxu0 0
        %1968 = vmatpush1.bf16.msra.mxu0 %v1946
        %1969 = vmatprep.subr.bf16.mxu0 0
        %1970 = vmatpush1.bf16.msra.mxu0 %v1945
        %1971 = vmatprep.subr.bf16.mxu0 0
        %1972 = vmatpush2.bf16.msra.mxu0 0
        %1973 = vmatprep.subr.bf16.mxu0 0
        %1974 = vmatpush2.bf16.msra.mxu0 0
        %1975 = vmatprep.subr.bf16.mxu0 0
        %1976 = vmatpush2.bf16.msra.mxu0 0
        %1977 = vmatprep.subr.bf16.mxu0 0
        %1978 = vmatpush2.bf16.msra.mxu0 0
        %1979 = vmatprep.subr.bf16.mxu0 0
        %1980 = vmatpush2.bf16.msra.mxu0 0
        %1981 = vmatprep.subr.bf16.mxu0 0
        %1982 = vmatpush2.bf16.msra.mxu0 0
        %1983 = vmatprep.subr.bf16.mxu0 0
        %1984 = vmatpush2.bf16.msra.mxu0 0
        %1985 = vmatprep.subr.bf16.mxu0 0
        %1986 = vmatpush2.bf16.msra.mxu0 0
        %1987 = vmatprep.mubr.bf16.mxu0 0
        %1988 = vmatmul.mubr.bf16.gmra.mxu0 %v1950
        %v1989 = vpop.f32.mrf.mxu0
        %v1990 = vadd.f32 %v1935, %v1989
        %v1991 = vpop.f32.mrf.mxu0
        %v1992 = vpop.f32.mrf.mxu0
        %v1993 = vadd.f32 %v1935, %v1992
        %v1994 = vpop.f32.mrf.mxu0
        %1995 = vmatprep.mubr.bf16.mxu0 0
        %1996 = vmatmul.mubr.bf16.gmra.mxu0 %v1953
        %v1997 = vpop.f32.mrf.mxu0
        %v1998 = vadd.f32 %v1935, %v1997
        %v1999 = vpop.f32.mrf.mxu0
        %v2000 = vpop.f32.mrf.mxu0
        %v2001 = vpop.f32.mrf.mxu0
        %2002 = vdwg.mxu0
        %v2003 = vmul.f32 %v1990, 0.5
        %v2004 = vmul.f32 %v1993, 0.5
        %v2005 = vmul.f32 %v1998, 0.5
        %v2006 = vmul.f32 %v1990, 0.044715
        %v2007 = vmul.f32 %v1993, 0.044715
        %v2008 = vmul.f32 %v1998, 0.044715
        %v2009 = vmul.f32 %v2006, %v1990
        %v2010 = vmul.f32 %v2007, %v1993
        %v2011 = vmul.f32 %v2008, %v1998
        %v2012 = vmul.f32 %v2009, %v1990
        %v2013 = vmul.f32 %v2010, %v1993
        %v2014 = vmul.f32 %v2011, %v1998
        %v2015 = vadd.f32 %v1990, %v2012
        %v2016 = vadd.f32 %v1993, %v2013
        %v2017 = vadd.f32 %v1998, %v2014
        %v2018 = vmul.f32 %v2015, 0.7978846
        %v2019 = vmul.f32 %v2016, 0.7978846
        %v2020 = vmul.f32 %v2017, 0.7978846
        %v2021 = vtanh.pop %v2018
        %v2022 = vtanh.pop %v2019
        %v2023 = vtanh.pop %v2020
        %v2024 = vadd.f32 %v2021, 1.0
        %v2025 = vadd.f32 %v2022, 1.0
        %v2026 = vadd.f32 %v2023, 1.0
        %v2027 = vmul.f32 %v2003, %v2024
        %v2028 = vmul.f32 %v2004, %v2025
        %v2029 = vmul.f32 %v2005, %v2026
        %v2030 = vpack.c.bf16 %v2028, %v2027
        %v2031 = vpack.c.bf16 %v2029, %v2029
        %v2032 = vld [vmem:[%s619] sm:$0xf]
        %v2033 = vld [vmem:[%s619 + $0x4] sm:$0xf]
        %v2034 = vld [vmem:[%s619 + $0x8] sm:$0xf]
        %v2035 = vld [vmem:[%s619 + $0xc] sm:$0xf]
        %v2036 = vld [vmem:[%s619 + $0x10] sm:$0xf]
        %v2037 = vld [vmem:[%s619 + $0x14] sm:$0xf]
        %v2038 = vld [vmem:[%s619 + $0x18] sm:$0xf]
        %v2039 = vld [vmem:[%s619 + $0x1c] sm:$0xf]
        %v2040 = vld [vmem:[%s619 + $0x20] sm:$0xf]
        %v2041 = vld [vmem:[%s619 + $0x24] sm:$0xf]
        %v2042 = vld [vmem:[%s619 + $0x28] sm:$0xf]
        %v2043 = vld [vmem:[%s619 + $0x2c] sm:$0xf]
        %v2044 = vld [vmem:[%s619 + $0x30] sm:$0xf]
        %v2045 = vld [vmem:[%s619 + $0x34] sm:$0xf]
        %v2046 = vld [vmem:[%s619 + $0x38] sm:$0xf]
        %v2047 = vld [vmem:[%s619 + $0x3c] sm:$0xf]
        %v2064 = vunpack.c.l.b16 %v2032
        %v2065 = vunpack.c.l.b16 %v2033
        %v2066 = vunpack.c.l.b16 %v2034
        %v2067 = vunpack.c.l.b16 %v2035
        %v2068 = vunpack.c.l.b16 %v2036
        %v2069 = vunpack.c.l.b16 %v2037
        %v2070 = vunpack.c.l.b16 %v2038
        %v2071 = vunpack.c.l.b16 %v2039
        %v2072 = vunpack.c.l.b16 %v2040
        %v2073 = vunpack.c.l.b16 %v2041
        %v2074 = vunpack.c.l.b16 %v2042
        %v2075 = vunpack.c.l.b16 %v2043
        %v2076 = vunpack.c.l.b16 %v2044
        %v2077 = vunpack.c.l.b16 %v2045
        %v2078 = vunpack.c.l.b16 %v2046
        %v2079 = vunpack.c.l.b16 %v2047
        %v2080 = vpack.c.b16 %v2065, %v2064
        %v2081 = vpack.c.b16 %v2067, %v2066
        %v2082 = vpack.c.b16 %v2069, %v2068
        %v2083 = vpack.c.b16 %v2071, %v2070
        %v2084 = vpack.c.b16 %v2073, %v2072
        %v2085 = vpack.c.b16 %v2075, %v2074
        %v2086 = vpack.c.b16 %v2077, %v2076
        %v2087 = vpack.c.b16 %v2079, %v2078
        %2096 = vmatprep.subr.bf16.mxu0 0
        %2097 = vmatpush1.bf16.msra.mxu0 %v2087
        %2098 = vmatprep.subr.bf16.mxu0 0
        %2099 = vmatpush1.bf16.msra.mxu0 %v2086
        %2100 = vmatprep.subr.bf16.mxu0 0
        %2101 = vmatpush1.bf16.msra.mxu0 %v2085
        %2102 = vmatprep.subr.bf16.mxu0 0
        %2103 = vmatpush1.bf16.msra.mxu0 %v2084
        %2104 = vmatprep.subr.bf16.mxu0 0
        %2105 = vmatpush1.bf16.msra.mxu0 %v2083
        %2106 = vmatprep.subr.bf16.mxu0 0
        %2107 = vmatpush1.bf16.msra.mxu0 %v2082
        %2108 = vmatprep.subr.bf16.mxu0 0
        %2109 = vmatpush1.bf16.msra.mxu0 %v2081
        %2110 = vmatprep.subr.bf16.mxu0 0
        %2111 = vmatpush1.bf16.msra.mxu0 %v2080
        %2112 = vmatprep.subr.bf16.mxu0 0
        %2113 = vmatpush2.bf16.msra.mxu0 0
        %2114 = vmatprep.subr.bf16.mxu0 0
        %2115 = vmatpush2.bf16.msra.mxu0 0
        %2116 = vmatprep.subr.bf16.mxu0 0
        %2117 = vmatpush2.bf16.msra.mxu0 0
        %2118 = vmatprep.subr.bf16.mxu0 0
        %2119 = vmatpush2.bf16.msra.mxu0 0
        %2120 = vmatprep.subr.bf16.mxu0 0
        %2121 = vmatpush2.bf16.msra.mxu0 0
        %2122 = vmatprep.subr.bf16.mxu0 0
        %2123 = vmatpush2.bf16.msra.mxu0 0
        %2124 = vmatprep.subr.bf16.mxu0 0
        %2125 = vmatpush2.bf16.msra.mxu0 0
        %2126 = vmatprep.subr.bf16.mxu0 0
        %2127 = vmatpush2.bf16.msra.mxu0 0
        %2128 = vmatprep.mubr.bf16.mxu0 0
        %2129 = vmatmul.mubr.bf16.gmra.mxu0 %v2030
        %v2130 = vpop.f32.mrf.mxu0
        %v2131 = vadd.f32 0.0, %v2130
        %v2132 = vpop.f32.mrf.mxu0
        %v2133 = vpop.f32.mrf.mxu0
        %v2134 = vadd.f32 0.0, %v2133
        %v2135 = vpop.f32.mrf.mxu0
        %2136 = vmatprep.mubr.bf16.mxu0 0
        %2137 = vmatmul.mubr.bf16.gmra.mxu0 %v2031
        %v2138 = vpop.f32.mrf.mxu0
        %v2139 = vadd.f32 0.0, %v2138
        %v2140 = vpop.f32.mrf.mxu0
        %v2141 = vpop.f32.mrf.mxu0
        %v2142 = vpop.f32.mrf.mxu0
        %2143 = vdwg.mxu0
        %v2144 = vadd.f32 %v1868, %v2131
        %v2145 = vadd.f32 %v1869, %v2134
        %v2146 = vadd.f32 %v1870, %v2139
        %v2147 = vlaneseq
        %v2148 = vshrl.u32 %v2147, 7
        %v2149 = vsub.s32 5, %v2148
        %v2150 = vrot.slane %v739, %v2149
        %v2151 = vadd.f32 %v2144, %v2150
        %v2152 = vadd.f32 %v2145, %v2150
        %v2153 = vadd.f32 %v2146, %v2150
        %2154 = vst.msk [vmem:[#allocation2] sm:$0xff] %vm767, %v2151
        %2155 = vst.msk [vmem:[#allocation2 + $0x8] sm:$0xff] %vm767, %v2152
        %2156 = vst.msk [vmem:[#allocation2 + $0x10] sm:$0x1] %vm898, %v2153
        %p2157 = scmp.eq.s32.totalorder %s33, 1
        // Predicated region
        $region81: #{se_vit_forward.1} parent=75 // pred_check
          %p2158 = pneg %p2157
        $region82: #{se_vit_forward.1} parent=75 // pred_check_branch
          %2160 = sbr.rel (%p2158) target = $region84
        $region83: #{se_vit_forward.1} parent=75 // pred_region
          %v2161 = vld [vmem:[%s11] sm:$0x3]
          %v2162 = vsel %vm898, %v2151, 0.0
          %2163 = vadd.xlane.f32.xlu0 %v2162
          %v2164 = vpop.xlane.xlu0 %2163
          %v2165 = vmul.f32 %v2164, %v902
          %v2166 = vsub.f32 %v2151, %v2165
          %v2167 = vmul.f32 %v2166, %v2166
          %v2168 = vsel %vm898, %v2167, 0.0
          %2169 = vadd.xlane.f32.xlu0 %v2168
          %v2170 = vpop.xlane.xlu0 %2169
          %v2171 = vmul.f32 %v2170, %v902
          %v2172 = vadd.f32 %v2171, 1e-05
          %v2173 = vrsqrt.pop %v2172
          %v2174 = vmul.f32 %v2166, %v2173
          %v2175 = vmul.f32 %v2174, %v2161
          %v2177 = vrot.slane %v2161, 1
          %v2179 = vadd.f32 %v2175, %v2177
          %v2180 = vpack.c.bf16 %v2179, %v2179
          %v2181 = vld [vmem:[%s12] sm:$0xf]
          %v2182 = vld [vmem:[%s12 + $0x4] sm:$0xf]
          %v2183 = vld [vmem:[%s12 + $0x8] sm:$0xf]
          %v2184 = vld [vmem:[%s12 + $0xc] sm:$0xf]
          %v2185 = vld [vmem:[%s13] sm:$0x1]
          %v2190 = vunpack.c.l.b16 %v2181
          %v2191 = vunpack.c.l.b16 %v2182
          %v2192 = vunpack.c.l.b16 %v2183
          %v2193 = vunpack.c.l.b16 %v2184
          %v2194 = vpack.c.b16 %v2191, %v2190
          %v2195 = vpack.c.b16 %v2193, %v2192
          %v2199 = vsel %vm767, %v2180, 0
          %2201 = vmatprep.subr.bf16.mxu0 0
          %2202 = vmatpush1.bf16.msra.mxu0 0
          %2203 = vmatprep.subr.bf16.mxu0 0
          %2204 = vmatpush1.bf16.msra.mxu0 0
          %2205 = vmatprep.subr.bf16.mxu0 0
          %2206 = vmatpush1.bf16.msra.mxu0 0
          %2207 = vmatprep.subr.bf16.mxu0 0
          %2208 = vmatpush1.bf16.msra.mxu0 0
          %2209 = vmatprep.subr.bf16.mxu0 0
          %2210 = vmatpush1.bf16.msra.mxu0 0
          %2211 = vmatprep.subr.bf16.mxu0 0
          %2212 = vmatpush1.bf16.msra.mxu0 0
          %2213 = vmatprep.subr.bf16.mxu0 0
          %2214 = vmatpush1.bf16.msra.mxu0 %v2195
          %2215 = vmatprep.subr.bf16.mxu0 0
          %2216 = vmatpush1.bf16.msra.mxu0 %v2194
          %2217 = vmatprep.subr.bf16.mxu0 0
          %2218 = vmatpush2.bf16.msra.mxu0 0
          %2219 = vmatprep.subr.bf16.mxu0 0
          %2220 = vmatpush2.bf16.msra.mxu0 0
          %2221 = vmatprep.subr.bf16.mxu0 0
          %2222 = vmatpush2.bf16.msra.mxu0 0
          %2223 = vmatprep.subr.bf16.mxu0 0
          %2224 = vmatpush2.bf16.msra.mxu0 0
          %2225 = vmatprep.subr.bf16.mxu0 0
          %2226 = vmatpush2.bf16.msra.mxu0 0
          %2227 = vmatprep.subr.bf16.mxu0 0
          %2228 = vmatpush2.bf16.msra.mxu0 0
          %2229 = vmatprep.subr.bf16.mxu0 0
          %2230 = vmatpush2.bf16.msra.mxu0 0
          %2231 = vmatprep.subr.bf16.mxu0 0
          %2232 = vmatpush2.bf16.msra.mxu0 0
          %2233 = vmatprep.mubr.bf16.mxu0 0
          %2234 = vmatmul.mubr.bf16.gmra.mxu0 %v2199
          %v2235 = vpop.f32.mrf.mxu0
          %v2236 = vadd.f32 %v2185, %v2235
          %v2237 = vpop.f32.mrf.mxu0
          %v2238 = vpop.f32.mrf.mxu0
          %v2239 = vpop.f32.mrf.mxu0
          %2240 = vdwg.mxu0
          %2241 = vst.msk [vmem:[%s583] sm:$0x1] %vm839, %v2236
        $region84: #{se_vit_forward.1} parent=75 // pred_fallthru
          _
        %s2242 = sand.u32 %s387, 1
        %s2243 = scalar_lea.sflag [#allocation4], %s2242
        %s2244 = sand.u32 %s387, 1
        %s2245 = scalar_lea.vmem [#allocation3], %s2244
        // Predicated region
        $region85: #{se_vit_forward.1} parent=75 // pred_check
          %p2246 = pneg %p397
        $region86: #{se_vit_forward.1} parent=75 // pred_check_branch
          %2248 = sbr.rel (%p2246) target = $region88
        $region87: #{se_vit_forward.1} parent=75 // pred_region
          %s2250 = ssub.s32 16, 16
          %2251 = vsyncadd %s2243, %s2250
          %s2252 = smul.addr %s32, 16
          %s2253 = scalar_lea.hbm %s14, %s2252
          %s2255 = sshll.u32 %s2245, 4
          %s2256 = int_to_ptr.vmem [resolvable:$true] %s2255
          %2258 = dma.vmem_to_hbm [thread:$0]  %s2256, 16, %s2253, %s2243
        $region88: #{se_vit_forward.1} parent=75 // pred_fallthru
          _
      $region76: #{se_vit_forward.1} parent=5 // pred_fallthru
        _
      %p2259 = scmp.le.s32.totalorder 2, %s23
      // Predicated region
      $region89: #{se_vit_forward.1} parent=5 // pred_check
        %p2260 = pneg %p2259
      $region90: #{se_vit_forward.1} parent=5 // pred_check_branch
        %2262 = sbr.rel (%p2260) target = $region92
      $region91: #{se_vit_forward.1} parent=5 // pred_region
        %s2263 = ssub.s32 %s23, 2
        // Predicated region
        $region93: #{se_vit_forward.1} parent=91 // pred_check
          %p2264 = pneg %p403
        $region94: #{se_vit_forward.1} parent=91 // pred_check_branch
          %2266 = sbr.rel (%p2264) target = $region96
        $region95: #{se_vit_forward.1} parent=91 // pred_region
          %s2267 = sand.u32 %s388, 1
          %s2268 = scalar_lea.sflag [#allocation4], %s2267
          %s2269 = sand.u32 %s388, 1
          %s2270 = scalar_lea.vmem [#allocation3], %s2269
          %2271 = dma.done %s2268, 16
        $region96: #{se_vit_forward.1} parent=91 // pred_fallthru
          _
      $region92: #{se_vit_forward.1} parent=5 // pred_fallthru
        _
    $region6: #{se_vit_forward.1} parent=1 // loop_footer
      %s27 = sadd.s32 1, %s23
    $region7: #{se_vit_forward.1} parent=1 // loop_footer_branch
      %22 = sbr.rel target = $region3
    $region8: #{se_vit_forward.1} parent=1 // loop_exit
      _
    %2272 = vsyncpa [#allocation4], 1
    %s2273 = scalar_lea.sflag [#allocation4], 1
    %2274 = vsyncpa %s2273, 1

</llo_original>
